<compile_context>
chip_gen: v6e
topology: v6e:2x2x1
jax: 0.10.0
libtpu: 0.0.40
codegen_flags: <defaults>
</compile_context>

<pallas_src>
import functools

import jax
import jax.numpy as jnp
import numpy as np
from jax.experimental import pallas as pl
from jax.experimental.pallas import tpu as pltpu

EPS = 1e-5


def deconv_block_forward(x, weight, bias, gamma, beta, *, stride, padding, eps=EPS):
    """DeConvBlock.forward: ConvTranspose2d -> BatchNorm2d (batch stats) -> ReLU.

    x      : (N, Cin, H, W)
    weight : (Cin, Cout, K, K)   -- nn.ConvTranspose2d weight layout
    bias, gamma, beta : (Cout,)
    Returns (N, Cout, Ho, Wo) float32, Ho = (H-1)*stride - 2*padding + K.
    """
    N, Cin, H, W = x.shape
    wCin, Cout, K, K2 = weight.shape
    assert wCin == Cin and K == K2
    s, p = int(stride), int(padding)
    # TODO(synk): output_padding != 0 of ConvTranspose2d is not supported (unused here).
    Ho = (H - 1) * s - 2 * p + K
    Wo = (W - 1) * s - 2 * p + K

    # ---------------- static phase / tap geometry (all Python ints) ----------------
    # Output phase of tap kh: rh = (kh - p) mod s ; row shift dh = (kh - p - rh) // s.
    # Phase (rh, rw):  y[qh, qw] = sum_taps sum_ci x[qh - dh, qw - dw] * W[ci, co, kh, kw]
    # where the final output row is ho = s*qh + rh (same for columns).
    dh_of = [(kh - p - ((kh - p) % s)) // s for kh in range(K)]
    min_d, max_d = min(dh_of), max(dh_of)
    oh = max(0, max_d)                      # top zero padding of the source
    ow = max(0, max_d)                      # left zero padding of the source
    Hq = -(-Ho // s)                        # per-phase rows
    Wq = -(-Wo // s)                        # per-phase cols
    Wrow = ow + max(W, Wq - min_d)          # row stride of the flattened padded source
    Lacc = Hq * Wrow                        # flattened per-phase length (lanes)
    Lacc_pad = -(-Lacc // 128) * 128        # lane-dense: pad to a multiple of 128
    nph = s * s

    phase_taps = []                         # per phase: [(kh, kw, flat lane shift), ...]
    for rh in range(s):
        for rw in range(s):
            taps = []
            for kh in range(K):
                if (kh - p) % s != rh:
                    continue
                dh = (kh - p - rh) // s
                for kw in range(K):
                    if (kw - p) % s != rw:
                        continue
                    dw = (kw - p - rw) // s
                    taps.append((kh, kw, (oh - dh) * Wrow + (ow - dw)))
            phase_taps.append(taps)

    max_off = max(off for taps in phase_taps for (_, _, off) in taps)
    data_len = (oh + H) * Wrow                       # flat rows that hold real data
    Lflat = -(-max(data_len, max_off + Lacc_pad) // 128) * 128

    # Cin padded to a multiple of 16 so every tap is a whole bf16 sublane tile
    # (makes the in-kernel sublane concatenation tile-aligned; zero rows are free on MXU).
    Cp = -(-Cin // 16) * 16

    # per-phase column offsets into the packed weight matrix
    col_off = []
    acc_cols = 0
    for taps in phase_taps:
        col_off.append(acc_cols)
        acc_cols += len(taps) * Cp
    KKCp = acc_cols                                  # == K*K*Cp

    # ---------------- channel blocking (megacore only when sublane-full) -----------
    if Cout >= 16 and Cout % 16 == 0:
        cblk = Cout // 2
    else:
        cblk = Cout
    n_cblk = Cout // cblk

    # ---------------- wrapper-side prep (tiny; no transposes of x) -----------------
    xpad = jnp.pad(x, ((0, 0), (0, Cp - Cin), (oh, 0), (ow, Wrow - ow - W)))
    xflat = xpad.reshape(N, Cp, data_len)
    xflat = jnp.pad(xflat, ((0, 0), (0, 0), (0, Lflat - data_len))).astype(jnp.bfloat16)

    # weights packed per phase/tap: w_all[cb, j, col_off[ph] + t*Cp + ci] = W[ci, co, kh, kw]
    w_padc = jnp.pad(weight.astype(jnp.float32), ((0, Cp - Cin), (0, 0), (0, 0), (0, 0)))
    w_cols = []
    for taps in phase_taps:
        for (kh, kw, _) in taps:
            w_cols.append(jnp.transpose(w_padc[:, :, kh, kw]))   # (Cout, Cp)
    w_all = jnp.concatenate(w_cols, axis=1)                      # (Cout, K*K*Cp)
    w_all = w_all.reshape(n_cblk, cblk, KKCp).astype(jnp.bfloat16)

    b_pack = bias.astype(jnp.float32).reshape(n_cblk, cblk, 1)
    g_pack = gamma.astype(jnp.float32).reshape(n_cblk, cblk, 1)
    bt_pack = beta.astype(jnp.float32).reshape(n_cblk, cblk, 1)

    # valid-element masks per phase (static numpy constant, zeroes padded garbage lanes)
    masks_np = np.zeros((nph, 1, Lacc_pad), np.float32)
    for rh in range(s):
        for rw in range(s):
            hq_r = (Ho - rh + s - 1) // s
            wq_r = (Wo - rw + s - 1) // s
            m = np.zeros((Hq, Wrow), np.float32)
            m[:hq_r, :wq_r] = 1.0
            masks_np[rh * s + rw, 0, :Lacc] = m.reshape(-1)
    masks = jnp.asarray(masks_np)

    inv_count = 1.0 / float(N * Ho * Wo)

    # ---------------- the Pallas kernel --------------------------------------------
    def kernel(x_ref, w_ref, b_ref, g_ref, bt_ref, m_ref, o_ref, y_ref):
        # x_ref (N, Cp, Lflat) bf16 | w_ref (1, cblk, K*K*Cp) bf16
        # b/g/bt (1, cblk, 1) f32   | m_ref (nph, 1, Lacc_pad) f32
        # o_ref (nph, N, cblk, Lacc_pad) f32 | y_ref VMEM scratch, same shape as o_ref
        b = b_ref[0]                                            # (cblk, 1)
        s1 = jnp.zeros((cblk, Lacc_pad), jnp.float32)           # lane-wise BN sums
        s2 = jnp.zeros((cblk, Lacc_pad), jnp.float32)

        # Pass 1: per-phase transposed conv (+bias) as one fused MXU dot per (phase, n);
        # one-pass BN statistics accumulated lane-wise with VPU adds.
        for ph in range(nph):
            taps = phase_taps[ph]
            nt = len(taps)
            mask = m_ref[ph]                                    # (1, Lacc_pad)
            for n in range(N):
                if nt == 0:                                     # phase with no taps (K < s)
                    acc = jnp.zeros((cblk, Lacc_pad), jnp.float32)
                else:
                    wph = w_ref[0, :, col_off[ph]:col_off[ph] + nt * Cp]   # (cblk, nt*Cp)
                    xs = [x_ref[n, :, off:off + Lacc_pad] for (_, _, off) in taps]
                    xstk = xs[0] if nt == 1 else jnp.concatenate(xs, axis=0)
                    acc = jnp.dot(wph, xstk, preferred_element_type=jnp.float32)
                y = (acc + b) * mask                            # conv + bias, pad lanes -> 0
                s1 = s1 + y
                s2 = s2 + y * y
                y_ref[ph, n] = y

        # BatchNorm (training-mode biased batch stats) folded to per-channel scale + shift.
        mean = jnp.sum(s1, axis=1, keepdims=True) * inv_count   # (cblk, 1)
        var = jnp.sum(s2, axis=1, keepdims=True) * inv_count - mean * mean
        scale = g_ref[0] * jax.lax.rsqrt(var + eps)
        shift = bt_ref[0] - mean * scale

        # Pass 2: normalize + ReLU from scratch into o_ref (single writer of the output).
        for ph in range(nph):
            for n in range(N):
                o_ref[ph, n] = jnp.maximum(y_ref[ph, n] * scale + shift, 0.0)

    out = pl.pallas_call(
        kernel,
        out_shape=jax.ShapeDtypeStruct((nph, N, Cout, Lacc_pad), jnp.float32),
        grid_spec=pltpu.PrefetchScalarGridSpec(
            num_scalar_prefetch=0,
            grid=(n_cblk,),
            in_specs=[
                pl.BlockSpec((N, Cp, Lflat), lambda c: (0, 0, 0)),
                pl.BlockSpec((1, cblk, KKCp), lambda c: (c, 0, 0)),
                pl.BlockSpec((1, cblk, 1), lambda c: (c, 0, 0)),
                pl.BlockSpec((1, cblk, 1), lambda c: (c, 0, 0)),
                pl.BlockSpec((1, cblk, 1), lambda c: (c, 0, 0)),
                pl.BlockSpec((nph, 1, Lacc_pad), lambda c: (0, 0, 0)),
            ],
            out_specs=pl.BlockSpec((nph, N, cblk, Lacc_pad), lambda c: (0, 0, c, 0)),
            scratch_shapes=[pltpu.VMEM((nph, N, cblk, Lacc_pad), jnp.float32)],
        ),
        compiler_params=pltpu.CompilerParams(
            dimension_semantics=("parallel",),
            vmem_limit_bytes=16 * 1024 * 1024,
        ),
    )(xflat, w_all, b_pack, g_pack, bt_pack, masks)

    # -------- interleave phases into NCHW: one fused slice+transpose+reshape+crop --------
    out = out[..., :Lacc]                                   # drop lane padding
    out = out.reshape(s, s, N, Cout, Hq, Wrow)              # (rh, rw, n, co, qh, qw)
    out = jnp.transpose(out, (2, 3, 4, 0, 5, 1))            # (n, co, qh, rh, qw, rw)
    out = out.reshape(N, Cout, Hq * s, Wrow * s)[:, :, :Ho, :Wo]
    return out


def _reference(x, weight, bias, gamma, beta, *, stride, padding, eps=EPS):
    """Pure-JAX reference mirroring PyTorch semantics (NCHW), full f32."""
    Cin, Cout, K, _ = weight.shape
    w_conv = jnp.transpose(jnp.flip(weight, axis=(2, 3)), (1, 0, 2, 3)).astype(jnp.float32)
    conv = jax.lax.conv_general_dilated(
        x.astype(jnp.float32), w_conv,
        window_strides=(1, 1),
        padding=[(K - 1 - padding, K - 1 - padding)] * 2,
        lhs_dilation=(stride, stride),
        dimension_numbers=("NCHW", "OIHW", "NCHW"),
        precision=jax.lax.Precision.HIGHEST,
    ) + bias[None, :, None, None]
    mean = conv.mean(axis=(0, 2, 3), keepdims=True)
    var = ((conv - mean) ** 2).mean(axis=(0, 2, 3), keepdims=True)
    bn = gamma[None, :, None, None] * (conv - mean) * jax.lax.rsqrt(var + eps) \
        + beta[None, :, None, None]
    return jnp.maximum(bn, 0.0)


if __name__ == "__main__":
    key = jax.random.PRNGKey(0)
    kx, kw, kb, kg, kbe = jax.random.split(key, 5)

    # module config (small, consistent with DeConvBlock)
    N, Cin, H, W = 2, 4, 16, 16
    Cout, K, stride, padding = 8, 3, 2, 1

    x = jax.random.normal(kx, (N, Cin, H, W), dtype=jnp.float32)
    weight = 0.1 * jax.random.normal(kw, (Cin, Cout, K, K), dtype=jnp.float32)
    bias = 0.1 * jax.random.normal(kb, (Cout,), dtype=jnp.float32)
    gamma = 1.0 + 0.1 * jax.random.normal(kg, (Cout,), dtype=jnp.float32)
    beta = 0.1 * jax.random.normal(kbe, (Cout,), dtype=jnp.float32)

    fwd = jax.jit(functools.partial(deconv_block_forward, stride=stride, padding=padding))
    out = jax.block_until_ready(fwd(x, weight, bias, gamma, beta))

    ref = _reference(x, weight, bias, gamma, beta, stride=stride, padding=padding)
    Ho = (H - 1) * stride - 2 * padding + K
    Wo = (W - 1) * stride - 2 * padding + K
    assert out.shape == ref.shape == (N, Cout, Ho, Wo), (out.shape, ref.shape)
    # bf16 MXU operands vs f32-HIGHEST reference (BN divides by per-channel std): 2e-2 tol.
    max_err = float(jnp.max(jnp.abs(out - ref)))
    assert jnp.allclose(out, ref, atol=2e-2, rtol=2e-2), max_err

    print("KERNEL_OK")
</pallas_src>

<mosaic_0001>
module attributes {stable_mosaic.version = 11 : i64} {
  func.func @kernel(%arg0: i32, %arg1: memref<2x16x512xbf16, #tpu.memory_space<vmem>>, %arg2: memref<1x8x144xbf16, #tpu.memory_space<vmem>>, %arg3: memref<1x8x1xf32, #tpu.memory_space<vmem>>, %arg4: memref<1x8x1xf32, #tpu.memory_space<vmem>>, %arg5: memref<1x8x1xf32, #tpu.memory_space<vmem>>, %arg6: memref<4x1x384xf32, #tpu.memory_space<vmem>>, %arg7: memref<4x2x8x384xf32, #tpu.memory_space<vmem>>, %arg8: memref<4x2x8x384xf32, #tpu.memory_space<vmem>>) attributes {dimension_semantics = [#tpu.dimension_semantics<parallel>], iteration_bounds = array<i64: 1>, scalar_prefetch = 0 : i64, scratch_operands = 1 : i64, tpu.core_type = #tpu.core_type<tc>, window_params = [{pipeline_mode = #tpu.pipeline_mode<synchronous>, transform_indices = @transform_0, window_bounds = array<i64: 2, 16, 512>}, {transform_indices = @transform_1, window_bounds = array<i64: 1, 8, 144>}, {transform_indices = @transform_2, window_bounds = array<i64: 1, 8, 1>}, {transform_indices = @transform_3, window_bounds = array<i64: 1, 8, 1>}, {transform_indices = @transform_4, window_bounds = array<i64: 1, 8, 1>}, {pipeline_mode = #tpu.pipeline_mode<synchronous>, transform_indices = @transform_5, window_bounds = array<i64: 4, 1, 384>}, {transform_indices = @transform_6, window_bounds = array<i64: 4, 2, 8, 384>}]} {
    %c0 = arith.constant 0 : index
    %c0_0 = arith.constant 0 : index
    %c0_1 = arith.constant 0 : index
    %0 = vector.load %arg3[%c0, %c0_0, %c0_1] : memref<1x8x1xf32, #tpu.memory_space<vmem>>, vector<1x8x1xf32>
    %1 = vector.shape_cast %0 : vector<1x8x1xf32> to vector<8x1xf32>
    %cst = arith.constant 0.000000e+00 : f32
    %2 = vector.broadcast %cst : f32 to vector<8x384xf32>
    %cst_2 = arith.constant 0.000000e+00 : f32
    %3 = vector.broadcast %cst_2 : f32 to vector<8x384xf32>
    %c0_3 = arith.constant 0 : index
    %c0_4 = arith.constant 0 : index
    %c0_5 = arith.constant 0 : index
    %4 = vector.load %arg6[%c0_3, %c0_4, %c0_5] : memref<4x1x384xf32, #tpu.memory_space<vmem>>, vector<1x1x384xf32>
    %5 = vector.shape_cast %4 : vector<1x1x384xf32> to vector<1x384xf32>
    %c0_6 = arith.constant 0 : index
    %c0_7 = arith.constant 0 : index
    %c0_8 = arith.constant 0 : index
    %6 = vector.load %arg2[%c0_6, %c0_7, %c0_8] : memref<1x8x144xbf16, #tpu.memory_space<vmem>>, vector<1x8x16xbf16>
    %7 = vector.shape_cast %6 : vector<1x8x16xbf16> to vector<8x16xbf16>
    %c0_9 = arith.constant 0 : index
    %c0_10 = arith.constant 0 : index
    %c0_11 = arith.constant 0 : index
    %8 = vector.load %arg1[%c0_9, %c0_10, %c0_11] : memref<2x16x512xbf16, #tpu.memory_space<vmem>>, vector<1x16x384xbf16>
    %9 = vector.shape_cast %8 : vector<1x16x384xbf16> to vector<16x384xbf16>
    %cst_12 = arith.constant dense<0.000000e+00> : vector<8x384xf32>
    %10 = tpu.matmul %7, %9, %cst_12 {dimension_numbers = #tpu.dot_dimension_numbers<[1], [0], [0], [1], [0, 0, 1, 1], [], []>} : vector<8x16xbf16>, vector<16x384xbf16>, vector<8x384xf32> -> vector<8x384xf32>
    %11 = vector.broadcast %1 : vector<8x1xf32> to vector<8x384xf32>
    %12 = arith.addf %10, %11 : vector<8x384xf32>
    %13 = vector.broadcast %5 : vector<1x384xf32> to vector<8x384xf32>
    %14 = arith.mulf %12, %13 : vector<8x384xf32>
    %15 = arith.addf %2, %14 : vector<8x384xf32>
    %16 = arith.mulf %14, %14 : vector<8x384xf32>
    %17 = arith.addf %3, %16 : vector<8x384xf32>
    %c0_13 = arith.constant 0 : index
    %c0_14 = arith.constant 0 : index
    %c0_15 = arith.constant 0 : index
    %c0_16 = arith.constant 0 : index
    %18 = vector.load %arg8[%c0_13, %c0_14, %c0_15, %c0_16] : memref<4x2x8x384xf32, #tpu.memory_space<vmem>>, vector<1x1x8x384xf32>
    %19 = vector.shape_cast %18 : vector<1x1x8x384xf32> to vector<8x384xf32>
    %20 = vector.shape_cast %14 : vector<8x384xf32> to vector<1x1x8x384xf32>
    tpu.vector_store %arg8[%c0_13, %c0_14, %c0_15, %c0_16], %20 {strides = array<i32>} : memref<4x2x8x384xf32, #tpu.memory_space<vmem>>, vector<1x1x8x384xf32>,
    %c0_17 = arith.constant 0 : index
    %c0_18 = arith.constant 0 : index
    %c0_19 = arith.constant 0 : index
    %21 = vector.load %arg2[%c0_17, %c0_18, %c0_19] : memref<1x8x144xbf16, #tpu.memory_space<vmem>>, vector<1x8x16xbf16>
    %22 = vector.shape_cast %21 : vector<1x8x16xbf16> to vector<8x16xbf16>
    %c1 = arith.constant 1 : index
    %c0_20 = arith.constant 0 : index
    %c0_21 = arith.constant 0 : index
    %23 = vector.load %arg1[%c1, %c0_20, %c0_21] : memref<2x16x512xbf16, #tpu.memory_space<vmem>>, vector<1x16x384xbf16>
    %24 = vector.shape_cast %23 : vector<1x16x384xbf16> to vector<16x384xbf16>
    %cst_22 = arith.constant dense<0.000000e+00> : vector<8x384xf32>
    %25 = tpu.matmul %22, %24, %cst_22 {dimension_numbers = #tpu.dot_dimension_numbers<[1], [0], [0], [1], [0, 0, 1, 1], [], []>} : vector<8x16xbf16>, vector<16x384xbf16>, vector<8x384xf32> -> vector<8x384xf32>
    %26 = vector.broadcast %1 : vector<8x1xf32> to vector<8x384xf32>
    %27 = arith.addf %25, %26 : vector<8x384xf32>
    %28 = vector.broadcast %5 : vector<1x384xf32> to vector<8x384xf32>
    %29 = arith.mulf %27, %28 : vector<8x384xf32>
    %30 = arith.addf %15, %29 : vector<8x384xf32>
    %31 = arith.mulf %29, %29 : vector<8x384xf32>
    %32 = arith.addf %17, %31 : vector<8x384xf32>
    %c0_23 = arith.constant 0 : index
    %c1_24 = arith.constant 1 : index
    %c0_25 = arith.constant 0 : index
    %c0_26 = arith.constant 0 : index
    %33 = vector.load %arg8[%c0_23, %c1_24, %c0_25, %c0_26] : memref<4x2x8x384xf32, #tpu.memory_space<vmem>>, vector<1x1x8x384xf32>
    %34 = vector.shape_cast %33 : vector<1x1x8x384xf32> to vector<8x384xf32>
    %35 = vector.shape_cast %29 : vector<8x384xf32> to vector<1x1x8x384xf32>
    tpu.vector_store %arg8[%c0_23, %c1_24, %c0_25, %c0_26], %35 {strides = array<i32>} : memref<4x2x8x384xf32, #tpu.memory_space<vmem>>, vector<1x1x8x384xf32>,
    %c1_27 = arith.constant 1 : index
    %c0_28 = arith.constant 0 : index
    %c0_29 = arith.constant 0 : index
    %36 = vector.load %arg6[%c1_27, %c0_28, %c0_29] : memref<4x1x384xf32, #tpu.memory_space<vmem>>, vector<1x1x384xf32>
    %37 = vector.shape_cast %36 : vector<1x1x384xf32> to vector<1x384xf32>
    %c0_30 = arith.constant 0 : index
    %c0_31 = arith.constant 0 : index
    %c16 = arith.constant 16 : index
    %38 = vector.load %arg2[%c0_30, %c0_31, %c16] : memref<1x8x144xbf16, #tpu.memory_space<vmem>>, vector<1x8x32xbf16>
    %39 = vector.shape_cast %38 : vector<1x8x32xbf16> to vector<8x32xbf16>
    %c0_32 = arith.constant 0 : index
    %c0_33 = arith.constant 0 : index
    %c1_34 = arith.constant 1 : index
    %40 = vector.load %arg1[%c0_32, %c0_33, %c1_34] : memref<2x16x512xbf16, #tpu.memory_space<vmem>>, vector<1x16x384xbf16>
    %41 = vector.shape_cast %40 : vector<1x16x384xbf16> to vector<16x384xbf16>
    %c0_35 = arith.constant 0 : index
    %c0_36 = arith.constant 0 : index
    %c0_37 = arith.constant 0 : index
    %42 = vector.load %arg1[%c0_35, %c0_36, %c0_37] : memref<2x16x512xbf16, #tpu.memory_space<vmem>>, vector<1x16x384xbf16>
    %43 = vector.shape_cast %42 : vector<1x16x384xbf16> to vector<16x384xbf16>
    %44 = tpu.concatenate %41, %43 in 0 : vector<16x384xbf16>, vector<16x384xbf16> -> vector<32x384xbf16>
    %cst_38 = arith.constant dense<0.000000e+00> : vector<8x384xf32>
    %45 = tpu.matmul %39, %44, %cst_38 {dimension_numbers = #tpu.dot_dimension_numbers<[1], [0], [0], [1], [0, 0, 1, 1], [], []>} : vector<8x32xbf16>, vector<32x384xbf16>, vector<8x384xf32> -> vector<8x384xf32>
    %46 = vector.broadcast %1 : vector<8x1xf32> to vector<8x384xf32>
    %47 = arith.addf %45, %46 : vector<8x384xf32>
    %48 = vector.broadcast %37 : vector<1x384xf32> to vector<8x384xf32>
    %49 = arith.mulf %47, %48 : vector<8x384xf32>
    %50 = arith.addf %30, %49 : vector<8x384xf32>
    %51 = arith.mulf %49, %49 : vector<8x384xf32>
    %52 = arith.addf %32, %51 : vector<8x384xf32>
    %c1_39 = arith.constant 1 : index
    %c0_40 = arith.constant 0 : index
    %c0_41 = arith.constant 0 : index
    %c0_42 = arith.constant 0 : index
    %53 = vector.load %arg8[%c1_39, %c0_40, %c0_41, %c0_42] : memref<4x2x8x384xf32, #tpu.memory_space<vmem>>, vector<1x1x8x384xf32>
    %54 = vector.shape_cast %53 : vector<1x1x8x384xf32> to vector<8x384xf32>
    %55 = vector.shape_cast %49 : vector<8x384xf32> to vector<1x1x8x384xf32>
    tpu.vector_store %arg8[%c1_39, %c0_40, %c0_41, %c0_42], %55 {strides = array<i32>} : memref<4x2x8x384xf32, #tpu.memory_space<vmem>>, vector<1x1x8x384xf32>,
    %c0_43 = arith.constant 0 : index
    %c0_44 = arith.constant 0 : index
    %c16_45 = arith.constant 16 : index
    %56 = vector.load %arg2[%c0_43, %c0_44, %c16_45] : memref<1x8x144xbf16, #tpu.memory_space<vmem>>, vector<1x8x32xbf16>
    %57 = vector.shape_cast %56 : vector<1x8x32xbf16> to vector<8x32xbf16>
    %c1_46 = arith.constant 1 : index
    %c0_47 = arith.constant 0 : index
    %c1_48 = arith.constant 1 : index
    %58 = vector.load %arg1[%c1_46, %c0_47, %c1_48] : memref<2x16x512xbf16, #tpu.memory_space<vmem>>, vector<1x16x384xbf16>
    %59 = vector.shape_cast %58 : vector<1x16x384xbf16> to vector<16x384xbf16>
    %c1_49 = arith.constant 1 : index
    %c0_50 = arith.constant 0 : index
    %c0_51 = arith.constant 0 : index
    %60 = vector.load %arg1[%c1_49, %c0_50, %c0_51] : memref<2x16x512xbf16, #tpu.memory_space<vmem>>, vector<1x16x384xbf16>
    %61 = vector.shape_cast %60 : vector<1x16x384xbf16> to vector<16x384xbf16>
    %62 = tpu.concatenate %59, %61 in 0 : vector<16x384xbf16>, vector<16x384xbf16> -> vector<32x384xbf16>
    %cst_52 = arith.constant dense<0.000000e+00> : vector<8x384xf32>
    %63 = tpu.matmul %57, %62, %cst_52 {dimension_numbers = #tpu.dot_dimension_numbers<[1], [0], [0], [1], [0, 0, 1, 1], [], []>} : vector<8x32xbf16>, vector<32x384xbf16>, vector<8x384xf32> -> vector<8x384xf32>
    %64 = vector.broadcast %1 : vector<8x1xf32> to vector<8x384xf32>
    %65 = arith.addf %63, %64 : vector<8x384xf32>
    %66 = vector.broadcast %37 : vector<1x384xf32> to vector<8x384xf32>
    %67 = arith.mulf %65, %66 : vector<8x384xf32>
    %68 = arith.addf %50, %67 : vector<8x384xf32>
    %69 = arith.mulf %67, %67 : vector<8x384xf32>
    %70 = arith.addf %52, %69 : vector<8x384xf32>
    %c1_53 = arith.constant 1 : index
    %c1_54 = arith.constant 1 : index
    %c0_55 = arith.constant 0 : index
    %c0_56 = arith.constant 0 : index
    %71 = vector.load %arg8[%c1_53, %c1_54, %c0_55, %c0_56] : memref<4x2x8x384xf32, #tpu.memory_space<vmem>>, vector<1x1x8x384xf32>
    %72 = vector.shape_cast %71 : vector<1x1x8x384xf32> to vector<8x384xf32>
    %73 = vector.shape_cast %67 : vector<8x384xf32> to vector<1x1x8x384xf32>
    tpu.vector_store %arg8[%c1_53, %c1_54, %c0_55, %c0_56], %73 {strides = array<i32>} : memref<4x2x8x384xf32, #tpu.memory_space<vmem>>, vector<1x1x8x384xf32>,
    %c2 = arith.constant 2 : index
    %c0_57 = arith.constant 0 : index
    %c0_58 = arith.constant 0 : index
    %74 = vector.load %arg6[%c2, %c0_57, %c0_58] : memref<4x1x384xf32, #tpu.memory_space<vmem>>, vector<1x1x384xf32>
    %75 = vector.shape_cast %74 : vector<1x1x384xf32> to vector<1x384xf32>
    %c0_59 = arith.constant 0 : index
    %c0_60 = arith.constant 0 : index
    %c48 = arith.constant 48 : index
    %76 = vector.load %arg2[%c0_59, %c0_60, %c48] : memref<1x8x144xbf16, #tpu.memory_space<vmem>>, vector<1x8x32xbf16>
    %77 = vector.shape_cast %76 : vector<1x8x32xbf16> to vector<8x32xbf16>
    %c0_61 = arith.constant 0 : index
    %c0_62 = arith.constant 0 : index
    %c17 = arith.constant 17 : index
    %78 = vector.load %arg1[%c0_61, %c0_62, %c17] : memref<2x16x512xbf16, #tpu.memory_space<vmem>>, vector<1x16x384xbf16>
    %79 = vector.shape_cast %78 : vector<1x16x384xbf16> to vector<16x384xbf16>
    %c0_63 = arith.constant 0 : index
    %c0_64 = arith.constant 0 : index
    %c0_65 = arith.constant 0 : index
    %80 = vector.load %arg1[%c0_63, %c0_64, %c0_65] : memref<2x16x512xbf16, #tpu.memory_space<vmem>>, vector<1x16x384xbf16>
    %81 = vector.shape_cast %80 : vector<1x16x384xbf16> to vector<16x384xbf16>
    %82 = tpu.concatenate %79, %81 in 0 : vector<16x384xbf16>, vector<16x384xbf16> -> vector<32x384xbf16>
    %cst_66 = arith.constant dense<0.000000e+00> : vector<8x384xf32>
    %83 = tpu.matmul %77, %82, %cst_66 {dimension_numbers = #tpu.dot_dimension_numbers<[1], [0], [0], [1], [0, 0, 1, 1], [], []>} : vector<8x32xbf16>, vector<32x384xbf16>, vector<8x384xf32> -> vector<8x384xf32>
    %84 = vector.broadcast %1 : vector<8x1xf32> to vector<8x384xf32>
    %85 = arith.addf %83, %84 : vector<8x384xf32>
    %86 = vector.broadcast %75 : vector<1x384xf32> to vector<8x384xf32>
    %87 = arith.mulf %85, %86 : vector<8x384xf32>
    %88 = arith.addf %68, %87 : vector<8x384xf32>
    %89 = arith.mulf %87, %87 : vector<8x384xf32>
    %90 = arith.addf %70, %89 : vector<8x384xf32>
    %c2_67 = arith.constant 2 : index
    %c0_68 = arith.constant 0 : index
    %c0_69 = arith.constant 0 : index
    %c0_70 = arith.constant 0 : index
    %91 = vector.load %arg8[%c2_67, %c0_68, %c0_69, %c0_70] : memref<4x2x8x384xf32, #tpu.memory_space<vmem>>, vector<1x1x8x384xf32>
    %92 = vector.shape_cast %91 : vector<1x1x8x384xf32> to vector<8x384xf32>
    %93 = vector.shape_cast %87 : vector<8x384xf32> to vector<1x1x8x384xf32>
    tpu.vector_store %arg8[%c2_67, %c0_68, %c0_69, %c0_70], %93 {strides = array<i32>} : memref<4x2x8x384xf32, #tpu.memory_space<vmem>>, vector<1x1x8x384xf32>,
    %c0_71 = arith.constant 0 : index
    %c0_72 = arith.constant 0 : index
    %c48_73 = arith.constant 48 : index
    %94 = vector.load %arg2[%c0_71, %c0_72, %c48_73] : memref<1x8x144xbf16, #tpu.memory_space<vmem>>, vector<1x8x32xbf16>
    %95 = vector.shape_cast %94 : vector<1x8x32xbf16> to vector<8x32xbf16>
    %c1_74 = arith.constant 1 : index
    %c0_75 = arith.constant 0 : index
    %c17_76 = arith.constant 17 : index
    %96 = vector.load %arg1[%c1_74, %c0_75, %c17_76] : memref<2x16x512xbf16, #tpu.memory_space<vmem>>, vector<1x16x384xbf16>
    %97 = vector.shape_cast %96 : vector<1x16x384xbf16> to vector<16x384xbf16>
    %c1_77 = arith.constant 1 : index
    %c0_78 = arith.constant 0 : index
    %c0_79 = arith.constant 0 : index
    %98 = vector.load %arg1[%c1_77, %c0_78, %c0_79] : memref<2x16x512xbf16, #tpu.memory_space<vmem>>, vector<1x16x384xbf16>
    %99 = vector.shape_cast %98 : vector<1x16x384xbf16> to vector<16x384xbf16>
    %100 = tpu.concatenate %97, %99 in 0 : vector<16x384xbf16>, vector<16x384xbf16> -> vector<32x384xbf16>
    %cst_80 = arith.constant dense<0.000000e+00> : vector<8x384xf32>
    %101 = tpu.matmul %95, %100, %cst_80 {dimension_numbers = #tpu.dot_dimension_numbers<[1], [0], [0], [1], [0, 0, 1, 1], [], []>} : vector<8x32xbf16>, vector<32x384xbf16>, vector<8x384xf32> -> vector<8x384xf32>
    %102 = vector.broadcast %1 : vector<8x1xf32> to vector<8x384xf32>
    %103 = arith.addf %101, %102 : vector<8x384xf32>
    %104 = vector.broadcast %75 : vector<1x384xf32> to vector<8x384xf32>
    %105 = arith.mulf %103, %104 : vector<8x384xf32>
    %106 = arith.addf %88, %105 : vector<8x384xf32>
    %107 = arith.mulf %105, %105 : vector<8x384xf32>
    %108 = arith.addf %90, %107 : vector<8x384xf32>
    %c2_81 = arith.constant 2 : index
    %c1_82 = arith.constant 1 : index
    %c0_83 = arith.constant 0 : index
    %c0_84 = arith.constant 0 : index
    %109 = vector.load %arg8[%c2_81, %c1_82, %c0_83, %c0_84] : memref<4x2x8x384xf32, #tpu.memory_space<vmem>>, vector<1x1x8x384xf32>
    %110 = vector.shape_cast %109 : vector<1x1x8x384xf32> to vector<8x384xf32>
    %111 = vector.shape_cast %105 : vector<8x384xf32> to vector<1x1x8x384xf32>
    tpu.vector_store %arg8[%c2_81, %c1_82, %c0_83, %c0_84], %111 {strides = array<i32>} : memref<4x2x8x384xf32, #tpu.memory_space<vmem>>, vector<1x1x8x384xf32>,
    %c3 = arith.constant 3 : index
    %c0_85 = arith.constant 0 : index
    %c0_86 = arith.constant 0 : index
    %112 = vector.load %arg6[%c3, %c0_85, %c0_86] : memref<4x1x384xf32, #tpu.memory_space<vmem>>, vector<1x1x384xf32>
    %113 = vector.shape_cast %112 : vector<1x1x384xf32> to vector<1x384xf32>
    %c0_87 = arith.constant 0 : index
    %c0_88 = arith.constant 0 : index
    %c80 = arith.constant 80 : index
    %114 = vector.load %arg2[%c0_87, %c0_88, %c80] : memref<1x8x144xbf16, #tpu.memory_space<vmem>>, vector<1x8x64xbf16>
    %115 = vector.shape_cast %114 : vector<1x8x64xbf16> to vector<8x64xbf16>
    %c0_89 = arith.constant 0 : index
    %c0_90 = arith.constant 0 : index
    %c18 = arith.constant 18 : index
    %116 = vector.load %arg1[%c0_89, %c0_90, %c18] : memref<2x16x512xbf16, #tpu.memory_space<vmem>>, vector<1x16x384xbf16>
    %117 = vector.shape_cast %116 : vector<1x16x384xbf16> to vector<16x384xbf16>
    %c0_91 = arith.constant 0 : index
    %c0_92 = arith.constant 0 : index
    %c17_93 = arith.constant 17 : index
    %118 = vector.load %arg1[%c0_91, %c0_92, %c17_93] : memref<2x16x512xbf16, #tpu.memory_space<vmem>>, vector<1x16x384xbf16>
    %119 = vector.shape_cast %118 : vector<1x16x384xbf16> to vector<16x384xbf16>
    %c0_94 = arith.constant 0 : index
    %c0_95 = arith.constant 0 : index
    %c1_96 = arith.constant 1 : index
    %120 = vector.load %arg1[%c0_94, %c0_95, %c1_96] : memref<2x16x512xbf16, #tpu.memory_space<vmem>>, vector<1x16x384xbf16>
    %121 = vector.shape_cast %120 : vector<1x16x384xbf16> to vector<16x384xbf16>
    %c0_97 = arith.constant 0 : index
    %c0_98 = arith.constant 0 : index
    %c0_99 = arith.constant 0 : index
    %122 = vector.load %arg1[%c0_97, %c0_98, %c0_99] : memref<2x16x512xbf16, #tpu.memory_space<vmem>>, vector<1x16x384xbf16>
    %123 = vector.shape_cast %122 : vector<1x16x384xbf16> to vector<16x384xbf16>
    %124 = tpu.concatenate %117, %119, %121, %123 in 0 : vector<16x384xbf16>, vector<16x384xbf16>, vector<16x384xbf16>, vector<16x384xbf16> -> vector<64x384xbf16>
    %cst_100 = arith.constant dense<0.000000e+00> : vector<8x384xf32>
    %125 = tpu.matmul %115, %124, %cst_100 {dimension_numbers = #tpu.dot_dimension_numbers<[1], [0], [0], [1], [0, 0, 1, 1], [], []>} : vector<8x64xbf16>, vector<64x384xbf16>, vector<8x384xf32> -> vector<8x384xf32>
    %126 = vector.broadcast %1 : vector<8x1xf32> to vector<8x384xf32>
    %127 = arith.addf %125, %126 : vector<8x384xf32>
    %128 = vector.broadcast %113 : vector<1x384xf32> to vector<8x384xf32>
    %129 = arith.mulf %127, %128 : vector<8x384xf32>
    %130 = arith.addf %106, %129 : vector<8x384xf32>
    %131 = arith.mulf %129, %129 : vector<8x384xf32>
    %132 = arith.addf %108, %131 : vector<8x384xf32>
    %c3_101 = arith.constant 3 : index
    %c0_102 = arith.constant 0 : index
    %c0_103 = arith.constant 0 : index
    %c0_104 = arith.constant 0 : index
    %133 = vector.load %arg8[%c3_101, %c0_102, %c0_103, %c0_104] : memref<4x2x8x384xf32, #tpu.memory_space<vmem>>, vector<1x1x8x384xf32>
    %134 = vector.shape_cast %133 : vector<1x1x8x384xf32> to vector<8x384xf32>
    %135 = vector.shape_cast %129 : vector<8x384xf32> to vector<1x1x8x384xf32>
    tpu.vector_store %arg8[%c3_101, %c0_102, %c0_103, %c0_104], %135 {strides = array<i32>} : memref<4x2x8x384xf32, #tpu.memory_space<vmem>>, vector<1x1x8x384xf32>,
    %c0_105 = arith.constant 0 : index
    %c0_106 = arith.constant 0 : index
    %c80_107 = arith.constant 80 : index
    %136 = vector.load %arg2[%c0_105, %c0_106, %c80_107] : memref<1x8x144xbf16, #tpu.memory_space<vmem>>, vector<1x8x64xbf16>
    %137 = vector.shape_cast %136 : vector<1x8x64xbf16> to vector<8x64xbf16>
    %c1_108 = arith.constant 1 : index
    %c0_109 = arith.constant 0 : index
    %c18_110 = arith.constant 18 : index
    %138 = vector.load %arg1[%c1_108, %c0_109, %c18_110] : memref<2x16x512xbf16, #tpu.memory_space<vmem>>, vector<1x16x384xbf16>
    %139 = vector.shape_cast %138 : vector<1x16x384xbf16> to vector<16x384xbf16>
    %c1_111 = arith.constant 1 : index
    %c0_112 = arith.constant 0 : index
    %c17_113 = arith.constant 17 : index
    %140 = vector.load %arg1[%c1_111, %c0_112, %c17_113] : memref<2x16x512xbf16, #tpu.memory_space<vmem>>, vector<1x16x384xbf16>
    %141 = vector.shape_cast %140 : vector<1x16x384xbf16> to vector<16x384xbf16>
    %c1_114 = arith.constant 1 : index
    %c0_115 = arith.constant 0 : index
    %c1_116 = arith.constant 1 : index
    %142 = vector.load %arg1[%c1_114, %c0_115, %c1_116] : memref<2x16x512xbf16, #tpu.memory_space<vmem>>, vector<1x16x384xbf16>
    %143 = vector.shape_cast %142 : vector<1x16x384xbf16> to vector<16x384xbf16>
    %c1_117 = arith.constant 1 : index
    %c0_118 = arith.constant 0 : index
    %c0_119 = arith.constant 0 : index
    %144 = vector.load %arg1[%c1_117, %c0_118, %c0_119] : memref<2x16x512xbf16, #tpu.memory_space<vmem>>, vector<1x16x384xbf16>
    %145 = vector.shape_cast %144 : vector<1x16x384xbf16> to vector<16x384xbf16>
    %146 = tpu.concatenate %139, %141, %143, %145 in 0 : vector<16x384xbf16>, vector<16x384xbf16>, vector<16x384xbf16>, vector<16x384xbf16> -> vector<64x384xbf16>
    %cst_120 = arith.constant dense<0.000000e+00> : vector<8x384xf32>
    %147 = tpu.matmul %137, %146, %cst_120 {dimension_numbers = #tpu.dot_dimension_numbers<[1], [0], [0], [1], [0, 0, 1, 1], [], []>} : vector<8x64xbf16>, vector<64x384xbf16>, vector<8x384xf32> -> vector<8x384xf32>
    %148 = vector.broadcast %1 : vector<8x1xf32> to vector<8x384xf32>
    %149 = arith.addf %147, %148 : vector<8x384xf32>
    %150 = vector.broadcast %113 : vector<1x384xf32> to vector<8x384xf32>
    %151 = arith.mulf %149, %150 : vector<8x384xf32>
    %152 = arith.addf %130, %151 : vector<8x384xf32>
    %153 = arith.mulf %151, %151 : vector<8x384xf32>
    %154 = arith.addf %132, %153 : vector<8x384xf32>
    %c3_121 = arith.constant 3 : index
    %c1_122 = arith.constant 1 : index
    %c0_123 = arith.constant 0 : index
    %c0_124 = arith.constant 0 : index
    %155 = vector.load %arg8[%c3_121, %c1_122, %c0_123, %c0_124] : memref<4x2x8x384xf32, #tpu.memory_space<vmem>>, vector<1x1x8x384xf32>
    %156 = vector.shape_cast %155 : vector<1x1x8x384xf32> to vector<8x384xf32>
    %157 = vector.shape_cast %151 : vector<8x384xf32> to vector<1x1x8x384xf32>
    tpu.vector_store %arg8[%c3_121, %c1_122, %c0_123, %c0_124], %157 {strides = array<i32>} : memref<4x2x8x384xf32, #tpu.memory_space<vmem>>, vector<1x1x8x384xf32>,
    %cst_125 = arith.constant dense<0.000000e+00> : vector<8xf32>
    %158 = vector.multi_reduction <add>, %152, %cst_125 [1] : vector<8x384xf32> to vector<8xf32>
    %159 = vector.shape_cast %158 : vector<8xf32> to vector<8x1xf32>
    %cst_126 = arith.constant 5.20291389E-4 : f32
    %160 = vector.broadcast %cst_126 : f32 to vector<8x1xf32>
    %161 = arith.mulf %159, %160 : vector<8x1xf32>
    %cst_127 = arith.constant dense<0.000000e+00> : vector<8xf32>
    %162 = vector.multi_reduction <add>, %154, %cst_127 [1] : vector<8x384xf32> to vector<8xf32>
    %163 = vector.shape_cast %162 : vector<8xf32> to vector<8x1xf32>
    %cst_128 = arith.constant 5.20291389E-4 : f32
    %164 = vector.broadcast %cst_128 : f32 to vector<8x1xf32>
    %165 = arith.mulf %163, %164 : vector<8x1xf32>
    %166 = arith.mulf %161, %161 : vector<8x1xf32>
    %167 = arith.subf %165, %166 : vector<8x1xf32>
    %c0_129 = arith.constant 0 : index
    %c0_130 = arith.constant 0 : index
    %c0_131 = arith.constant 0 : index
    %168 = vector.load %arg4[%c0_129, %c0_130, %c0_131] : memref<1x8x1xf32, #tpu.memory_space<vmem>>, vector<1x8x1xf32>
    %169 = vector.shape_cast %168 : vector<1x8x1xf32> to vector<8x1xf32>
    %cst_132 = arith.constant 9.99999974E-6 : f32
    %170 = vector.broadcast %cst_132 : f32 to vector<8x1xf32>
    %171 = arith.addf %167, %170 : vector<8x1xf32>
    %172 = math.rsqrt %171 : vector<8x1xf32>
    %173 = arith.mulf %169, %172 : vector<8x1xf32>
    %c0_133 = arith.constant 0 : index
    %c0_134 = arith.constant 0 : index
    %c0_135 = arith.constant 0 : index
    %174 = vector.load %arg5[%c0_133, %c0_134, %c0_135] : memref<1x8x1xf32, #tpu.memory_space<vmem>>, vector<1x8x1xf32>
    %175 = vector.shape_cast %174 : vector<1x8x1xf32> to vector<8x1xf32>
    %176 = arith.mulf %161, %173 : vector<8x1xf32>
    %177 = arith.subf %175, %176 : vector<8x1xf32>
    %c0_136 = arith.constant 0 : index
    %c0_137 = arith.constant 0 : index
    %c0_138 = arith.constant 0 : index
    %c0_139 = arith.constant 0 : index
    %178 = vector.load %arg8[%c0_136, %c0_137, %c0_138, %c0_139] : memref<4x2x8x384xf32, #tpu.memory_space<vmem>>, vector<1x1x8x384xf32>
    %179 = vector.shape_cast %178 : vector<1x1x8x384xf32> to vector<8x384xf32>
    %180 = vector.broadcast %173 : vector<8x1xf32> to vector<8x384xf32>
    %181 = arith.mulf %179, %180 : vector<8x384xf32>
    %182 = vector.broadcast %177 : vector<8x1xf32> to vector<8x384xf32>
    %183 = arith.addf %181, %182 : vector<8x384xf32>
    %cst_140 = arith.constant 0.000000e+00 : f32
    %184 = vector.broadcast %cst_140 : f32 to vector<8x384xf32>
    %185 = arith.maximumf %183, %184 : vector<8x384xf32>
    %c0_141 = arith.constant 0 : index
    %c0_142 = arith.constant 0 : index
    %c0_143 = arith.constant 0 : index
    %c0_144 = arith.constant 0 : index
    %186 = vector.load %arg7[%c0_141, %c0_142, %c0_143, %c0_144] : memref<4x2x8x384xf32, #tpu.memory_space<vmem>>, vector<1x1x8x384xf32>
    %187 = vector.shape_cast %186 : vector<1x1x8x384xf32> to vector<8x384xf32>
    %188 = vector.shape_cast %185 : vector<8x384xf32> to vector<1x1x8x384xf32>
    tpu.vector_store %arg7[%c0_141, %c0_142, %c0_143, %c0_144], %188 {strides = array<i32>} : memref<4x2x8x384xf32, #tpu.memory_space<vmem>>, vector<1x1x8x384xf32>,
    %c0_145 = arith.constant 0 : index
    %c1_146 = arith.constant 1 : index
    %c0_147 = arith.constant 0 : index
    %c0_148 = arith.constant 0 : index
    %189 = vector.load %arg8[%c0_145, %c1_146, %c0_147, %c0_148] : memref<4x2x8x384xf32, #tpu.memory_space<vmem>>, vector<1x1x8x384xf32>
    %190 = vector.shape_cast %189 : vector<1x1x8x384xf32> to vector<8x384xf32>
    %191 = vector.broadcast %173 : vector<8x1xf32> to vector<8x384xf32>
    %192 = arith.mulf %190, %191 : vector<8x384xf32>
    %193 = vector.broadcast %177 : vector<8x1xf32> to vector<8x384xf32>
    %194 = arith.addf %192, %193 : vector<8x384xf32>
    %cst_149 = arith.constant 0.000000e+00 : f32
    %195 = vector.broadcast %cst_149 : f32 to vector<8x384xf32>
    %196 = arith.maximumf %194, %195 : vector<8x384xf32>
    %c0_150 = arith.constant 0 : index
    %c1_151 = arith.constant 1 : index
    %c0_152 = arith.constant 0 : index
    %c0_153 = arith.constant 0 : index
    %197 = vector.load %arg7[%c0_150, %c1_151, %c0_152, %c0_153] : memref<4x2x8x384xf32, #tpu.memory_space<vmem>>, vector<1x1x8x384xf32>
    %198 = vector.shape_cast %197 : vector<1x1x8x384xf32> to vector<8x384xf32>
    %199 = vector.shape_cast %196 : vector<8x384xf32> to vector<1x1x8x384xf32>
    tpu.vector_store %arg7[%c0_150, %c1_151, %c0_152, %c0_153], %199 {strides = array<i32>} : memref<4x2x8x384xf32, #tpu.memory_space<vmem>>, vector<1x1x8x384xf32>,
    %c1_154 = arith.constant 1 : index
    %c0_155 = arith.constant 0 : index
    %c0_156 = arith.constant 0 : index
    %c0_157 = arith.constant 0 : index
    %200 = vector.load %arg8[%c1_154, %c0_155, %c0_156, %c0_157] : memref<4x2x8x384xf32, #tpu.memory_space<vmem>>, vector<1x1x8x384xf32>
    %201 = vector.shape_cast %200 : vector<1x1x8x384xf32> to vector<8x384xf32>
    %202 = vector.broadcast %173 : vector<8x1xf32> to vector<8x384xf32>
    %203 = arith.mulf %201, %202 : vector<8x384xf32>
    %204 = vector.broadcast %177 : vector<8x1xf32> to vector<8x384xf32>
    %205 = arith.addf %203, %204 : vector<8x384xf32>
    %cst_158 = arith.constant 0.000000e+00 : f32
    %206 = vector.broadcast %cst_158 : f32 to vector<8x384xf32>
    %207 = arith.maximumf %205, %206 : vector<8x384xf32>
    %c1_159 = arith.constant 1 : index
    %c0_160 = arith.constant 0 : index
    %c0_161 = arith.constant 0 : index
    %c0_162 = arith.constant 0 : index
    %208 = vector.load %arg7[%c1_159, %c0_160, %c0_161, %c0_162] : memref<4x2x8x384xf32, #tpu.memory_space<vmem>>, vector<1x1x8x384xf32>
    %209 = vector.shape_cast %208 : vector<1x1x8x384xf32> to vector<8x384xf32>
    %210 = vector.shape_cast %207 : vector<8x384xf32> to vector<1x1x8x384xf32>
    tpu.vector_store %arg7[%c1_159, %c0_160, %c0_161, %c0_162], %210 {strides = array<i32>} : memref<4x2x8x384xf32, #tpu.memory_space<vmem>>, vector<1x1x8x384xf32>,
    %c1_163 = arith.constant 1 : index
    %c1_164 = arith.constant 1 : index
    %c0_165 = arith.constant 0 : index
    %c0_166 = arith.constant 0 : index
    %211 = vector.load %arg8[%c1_163, %c1_164, %c0_165, %c0_166] : memref<4x2x8x384xf32, #tpu.memory_space<vmem>>, vector<1x1x8x384xf32>
    %212 = vector.shape_cast %211 : vector<1x1x8x384xf32> to vector<8x384xf32>
    %213 = vector.broadcast %173 : vector<8x1xf32> to vector<8x384xf32>
    %214 = arith.mulf %212, %213 : vector<8x384xf32>
    %215 = vector.broadcast %177 : vector<8x1xf32> to vector<8x384xf32>
    %216 = arith.addf %214, %215 : vector<8x384xf32>
    %cst_167 = arith.constant 0.000000e+00 : f32
    %217 = vector.broadcast %cst_167 : f32 to vector<8x384xf32>
    %218 = arith.maximumf %216, %217 : vector<8x384xf32>
    %c1_168 = arith.constant 1 : index
    %c1_169 = arith.constant 1 : index
    %c0_170 = arith.constant 0 : index
    %c0_171 = arith.constant 0 : index
    %219 = vector.load %arg7[%c1_168, %c1_169, %c0_170, %c0_171] : memref<4x2x8x384xf32, #tpu.memory_space<vmem>>, vector<1x1x8x384xf32>
    %220 = vector.shape_cast %219 : vector<1x1x8x384xf32> to vector<8x384xf32>
    %221 = vector.shape_cast %218 : vector<8x384xf32> to vector<1x1x8x384xf32>
    tpu.vector_store %arg7[%c1_168, %c1_169, %c0_170, %c0_171], %221 {strides = array<i32>} : memref<4x2x8x384xf32, #tpu.memory_space<vmem>>, vector<1x1x8x384xf32>,
    %c2_172 = arith.constant 2 : index
    %c0_173 = arith.constant 0 : index
    %c0_174 = arith.constant 0 : index
    %c0_175 = arith.constant 0 : index
    %222 = vector.load %arg8[%c2_172, %c0_173, %c0_174, %c0_175] : memref<4x2x8x384xf32, #tpu.memory_space<vmem>>, vector<1x1x8x384xf32>
    %223 = vector.shape_cast %222 : vector<1x1x8x384xf32> to vector<8x384xf32>
    %224 = vector.broadcast %173 : vector<8x1xf32> to vector<8x384xf32>
    %225 = arith.mulf %223, %224 : vector<8x384xf32>
    %226 = vector.broadcast %177 : vector<8x1xf32> to vector<8x384xf32>
    %227 = arith.addf %225, %226 : vector<8x384xf32>
    %cst_176 = arith.constant 0.000000e+00 : f32
    %228 = vector.broadcast %cst_176 : f32 to vector<8x384xf32>
    %229 = arith.maximumf %227, %228 : vector<8x384xf32>
    %c2_177 = arith.constant 2 : index
    %c0_178 = arith.constant 0 : index
    %c0_179 = arith.constant 0 : index
    %c0_180 = arith.constant 0 : index
    %230 = vector.load %arg7[%c2_177, %c0_178, %c0_179, %c0_180] : memref<4x2x8x384xf32, #tpu.memory_space<vmem>>, vector<1x1x8x384xf32>
    %231 = vector.shape_cast %230 : vector<1x1x8x384xf32> to vector<8x384xf32>
    %232 = vector.shape_cast %229 : vector<8x384xf32> to vector<1x1x8x384xf32>
    tpu.vector_store %arg7[%c2_177, %c0_178, %c0_179, %c0_180], %232 {strides = array<i32>} : memref<4x2x8x384xf32, #tpu.memory_space<vmem>>, vector<1x1x8x384xf32>,
    %c2_181 = arith.constant 2 : index
    %c1_182 = arith.constant 1 : index
    %c0_183 = arith.constant 0 : index
    %c0_184 = arith.constant 0 : index
    %233 = vector.load %arg8[%c2_181, %c1_182, %c0_183, %c0_184] : memref<4x2x8x384xf32, #tpu.memory_space<vmem>>, vector<1x1x8x384xf32>
    %234 = vector.shape_cast %233 : vector<1x1x8x384xf32> to vector<8x384xf32>
    %235 = vector.broadcast %173 : vector<8x1xf32> to vector<8x384xf32>
    %236 = arith.mulf %234, %235 : vector<8x384xf32>
    %237 = vector.broadcast %177 : vector<8x1xf32> to vector<8x384xf32>
    %238 = arith.addf %236, %237 : vector<8x384xf32>
    %cst_185 = arith.constant 0.000000e+00 : f32
    %239 = vector.broadcast %cst_185 : f32 to vector<8x384xf32>
    %240 = arith.maximumf %238, %239 : vector<8x384xf32>
    %c2_186 = arith.constant 2 : index
    %c1_187 = arith.constant 1 : index
    %c0_188 = arith.constant 0 : index
    %c0_189 = arith.constant 0 : index
    %241 = vector.load %arg7[%c2_186, %c1_187, %c0_188, %c0_189] : memref<4x2x8x384xf32, #tpu.memory_space<vmem>>, vector<1x1x8x384xf32>
    %242 = vector.shape_cast %241 : vector<1x1x8x384xf32> to vector<8x384xf32>
    %243 = vector.shape_cast %240 : vector<8x384xf32> to vector<1x1x8x384xf32>
    tpu.vector_store %arg7[%c2_186, %c1_187, %c0_188, %c0_189], %243 {strides = array<i32>} : memref<4x2x8x384xf32, #tpu.memory_space<vmem>>, vector<1x1x8x384xf32>,
    %c3_190 = arith.constant 3 : index
    %c0_191 = arith.constant 0 : index
    %c0_192 = arith.constant 0 : index
    %c0_193 = arith.constant 0 : index
    %244 = vector.load %arg8[%c3_190, %c0_191, %c0_192, %c0_193] : memref<4x2x8x384xf32, #tpu.memory_space<vmem>>, vector<1x1x8x384xf32>
    %245 = vector.shape_cast %244 : vector<1x1x8x384xf32> to vector<8x384xf32>
    %246 = vector.broadcast %173 : vector<8x1xf32> to vector<8x384xf32>
    %247 = arith.mulf %245, %246 : vector<8x384xf32>
    %248 = vector.broadcast %177 : vector<8x1xf32> to vector<8x384xf32>
    %249 = arith.addf %247, %248 : vector<8x384xf32>
    %cst_194 = arith.constant 0.000000e+00 : f32
    %250 = vector.broadcast %cst_194 : f32 to vector<8x384xf32>
    %251 = arith.maximumf %249, %250 : vector<8x384xf32>
    %c3_195 = arith.constant 3 : index
    %c0_196 = arith.constant 0 : index
    %c0_197 = arith.constant 0 : index
    %c0_198 = arith.constant 0 : index
    %252 = vector.load %arg7[%c3_195, %c0_196, %c0_197, %c0_198] : memref<4x2x8x384xf32, #tpu.memory_space<vmem>>, vector<1x1x8x384xf32>
    %253 = vector.shape_cast %252 : vector<1x1x8x384xf32> to vector<8x384xf32>
    %254 = vector.shape_cast %251 : vector<8x384xf32> to vector<1x1x8x384xf32>
    tpu.vector_store %arg7[%c3_195, %c0_196, %c0_197, %c0_198], %254 {strides = array<i32>} : memref<4x2x8x384xf32, #tpu.memory_space<vmem>>, vector<1x1x8x384xf32>,
    %c3_199 = arith.constant 3 : index
    %c1_200 = arith.constant 1 : index
    %c0_201 = arith.constant 0 : index
    %c0_202 = arith.constant 0 : index
    %255 = vector.load %arg8[%c3_199, %c1_200, %c0_201, %c0_202] : memref<4x2x8x384xf32, #tpu.memory_space<vmem>>, vector<1x1x8x384xf32>
    %256 = vector.shape_cast %255 : vector<1x1x8x384xf32> to vector<8x384xf32>
    %257 = vector.broadcast %173 : vector<8x1xf32> to vector<8x384xf32>
    %258 = arith.mulf %256, %257 : vector<8x384xf32>
    %259 = vector.broadcast %177 : vector<8x1xf32> to vector<8x384xf32>
    %260 = arith.addf %258, %259 : vector<8x384xf32>
    %cst_203 = arith.constant 0.000000e+00 : f32
    %261 = vector.broadcast %cst_203 : f32 to vector<8x384xf32>
    %262 = arith.maximumf %260, %261 : vector<8x384xf32>
    %c3_204 = arith.constant 3 : index
    %c1_205 = arith.constant 1 : index
    %c0_206 = arith.constant 0 : index
    %c0_207 = arith.constant 0 : index
    %263 = vector.load %arg7[%c3_204, %c1_205, %c0_206, %c0_207] : memref<4x2x8x384xf32, #tpu.memory_space<vmem>>, vector<1x1x8x384xf32>
    %264 = vector.shape_cast %263 : vector<1x1x8x384xf32> to vector<8x384xf32>
    %265 = vector.shape_cast %262 : vector<8x384xf32> to vector<1x1x8x384xf32>
    tpu.vector_store %arg7[%c3_204, %c1_205, %c0_206, %c0_207], %265 {strides = array<i32>} : memref<4x2x8x384xf32, #tpu.memory_space<vmem>>, vector<1x1x8x384xf32>,
    return
  }
  func.func @transform_0(%arg0: i32) -> (i32, i32, i32) {
    %c0_i32 = arith.constant 0 : i32
    %c0_i32_0 = arith.constant 0 : i32
    %c0_i32_1 = arith.constant 0 : i32
    %c0_i32_2 = arith.constant 0 : i32
    return %c0_i32, %c0_i32_0, %c0_i32_1 : i32, i32, i32
  }
  func.func @transform_1(%arg0: i32) -> (i32, i32, i32) {
    %c0_i32 = arith.constant 0 : i32
    %c0_i32_0 = arith.constant 0 : i32
    %c0_i32_1 = arith.constant 0 : i32
    return %arg0, %c0_i32, %c0_i32_0 : i32, i32, i32
  }
  func.func @transform_2(%arg0: i32) -> (i32, i32, i32) {
    %c0_i32 = arith.constant 0 : i32
    %c0_i32_0 = arith.constant 0 : i32
    %c0_i32_1 = arith.constant 0 : i32
    return %arg0, %c0_i32, %c0_i32_0 : i32, i32, i32
  }
  func.func @transform_3(%arg0: i32) -> (i32, i32, i32) {
    %c0_i32 = arith.constant 0 : i32
    %c0_i32_0 = arith.constant 0 : i32
    %c0_i32_1 = arith.constant 0 : i32
    return %arg0, %c0_i32, %c0_i32_0 : i32, i32, i32
  }
  func.func @transform_4(%arg0: i32) -> (i32, i32, i32) {
    %c0_i32 = arith.constant 0 : i32
    %c0_i32_0 = arith.constant 0 : i32
    %c0_i32_1 = arith.constant 0 : i32
    return %arg0, %c0_i32, %c0_i32_0 : i32, i32, i32
  }
  func.func @transform_5(%arg0: i32) -> (i32, i32, i32) {
    %c0_i32 = arith.constant 0 : i32
    %c0_i32_0 = arith.constant 0 : i32
    %c0_i32_1 = arith.constant 0 : i32
    %c0_i32_2 = arith.constant 0 : i32
    return %c0_i32, %c0_i32_0, %c0_i32_1 : i32, i32, i32
  }
  func.func @transform_6(%arg0: i32) -> (i32, i32, i32, i32) {
    %c0_i32 = arith.constant 0 : i32
    %c0_i32_0 = arith.constant 0 : i32
    %c0_i32_1 = arith.constant 0 : i32
    %c0_i32_2 = arith.constant 0 : i32
    return %c0_i32, %c0_i32_0, %arg0, %c0_i32_1 : i32, i32, i32, i32
  }
}

</mosaic_0001>

<llo_original>
// kernel: deconv_block_forward.1
$region0: #{deconv_block_forward.1}
  #allocation0 [shape = 'u32[]', space=smem, size = 0x4, offset = 0x4, fixed_abs, tag = 'smem constant byte address 0x4 - core index']
  #allocation1 [shape = 'u32[144,128]{1,0:T(1,128)}', space=vmem, size = 0x12000, scoped, tag = 'internal scratch']
  #allocation2 [shape = 'f32[4,2,8,384]{3,2,1,0:T(8,128)}', space=vmem, size = 0x18000, scoped, tag = 'scratch operand']
  %s0 = inlined_call_operand.vmem [shape: bf16[2,16,512], index: 0, kind: input, shape index: {}]
  %s1 = inlined_call_operand.vmem [shape: bf16[1,8,144], index: 1, kind: input, shape index: {}]
  %s2 = inlined_call_operand.vmem [shape: f32[1,8,1], index: 2, kind: input, shape index: {}]
  %s3 = inlined_call_operand.vmem [shape: f32[1,8,1], index: 3, kind: input, shape index: {}]
  %s4 = inlined_call_operand.vmem [shape: f32[1,8,1], index: 4, kind: input, shape index: {}]
  %s5 = inlined_call_operand.hbm [shape: f32[4,1,384], index: 5, kind: input, shape index: {}]
  %s6 = inlined_call_operand.vmem [shape: f32[4,2,8,384], index: 6, kind: output, shape index: {}]
  %s7 = sld [smem:[#allocation0]]
  $region38: #{deconv_block_forward.1} parent=0
    _
  %s9 = ssub.s32 1, %s7
  %s10 = scalar_select 0, %s9, %s7
  $region1: #{deconv_block_forward.1} parent=0
    #allocation3 [shape = 'u8[6144]{0}', space=vmem, size = 0x1800, scoped, tag = 'input window, operand 5, single buffered']
    #allocation4 [shape = 's32[1]{0}', space=sflag, size = 0x4, scoped, tag = 'scoped memory for deconv_block_forward.1']
    %11 = vsyncpa [#allocation4], 0
    // Predicated region
    $region2: #{deconv_block_forward.1} parent=1 // pred_check
      _
    $region3: #{deconv_block_forward.1} parent=1 // pred_check_branch
      %13 = sbr.rel (0) target = $region5
    $region4: #{deconv_block_forward.1} parent=1 // pred_region
      _
    $region5: #{deconv_block_forward.1} parent=1 // pred_fallthru
      _
    // Predicated region
    $region6: #{deconv_block_forward.1} parent=1 // pred_check
      _
    $region7: #{deconv_block_forward.1} parent=1 // pred_check_branch
      %15 = sbr.rel (0) target = $region9
    $region8: #{deconv_block_forward.1} parent=1 // pred_region
      _
    $region9: #{deconv_block_forward.1} parent=1 // pred_fallthru
      _
    // Predicated region
    $region10: #{deconv_block_forward.1} parent=1 // pred_check
      _
    $region11: #{deconv_block_forward.1} parent=1 // pred_check_branch
      %17 = sbr.rel (0) target = $region13
    $region12: #{deconv_block_forward.1} parent=1 // pred_region
      _
    $region13: #{deconv_block_forward.1} parent=1 // pred_fallthru
      _
    // Predicated region
    $region14: #{deconv_block_forward.1} parent=1 // pred_check
      _
    $region15: #{deconv_block_forward.1} parent=1 // pred_check_branch
      %19 = sbr.rel (0) target = $region17
    $region16: #{deconv_block_forward.1} parent=1 // pred_region
      _
    $region17: #{deconv_block_forward.1} parent=1 // pred_fallthru
      _
    // Predicated region
    $region18: #{deconv_block_forward.1} parent=1 // pred_check
      _
    $region19: #{deconv_block_forward.1} parent=1 // pred_check_branch
      %21 = sbr.rel (0) target = $region21
    $region20: #{deconv_block_forward.1} parent=1 // pred_region
      _
    $region21: #{deconv_block_forward.1} parent=1 // pred_fallthru
      _
    // Predicated region
    $region22: #{deconv_block_forward.1} parent=1 // pred_check
      _
    $region23: #{deconv_block_forward.1} parent=1 // pred_check_branch
      %23 = sbr.rel (0) target = $region25
    $region24: #{deconv_block_forward.1} parent=1 // pred_region
      %s25 = ssub.s32 192, 192
      %26 = vsyncadd [#allocation4], %s25
      %s27 = sshll.u32 [#allocation3], 4
      %s28 = int_to_ptr.vmem [resolvable:$true] %s27
      %33 = dma.hbm_to_vmem [thread:$0]  %s5, 192, %s28, [#allocation4], 48, 48, 3
    $region25: #{deconv_block_forward.1} parent=1 // pred_fallthru
      _
    // Predicated region
    $region26: #{deconv_block_forward.1} parent=1 // pred_check
      _
    $region27: #{deconv_block_forward.1} parent=1 // pred_check_branch
      %35 = sbr.rel (0) target = $region29
    $region28: #{deconv_block_forward.1} parent=1 // pred_region
      %36 = dma.done [#allocation4], 192
    $region29: #{deconv_block_forward.1} parent=1 // pred_fallthru
      _
    %v38 = vld [vmem:[%s2] sm:$0xff]
    %v39 = vld [vmem:[#allocation3] sm:$0x7]
    %v40 = vld [vmem:[%s1] sm:$0xf]
    %v41 = vld [vmem:[%s0] sm:$0xff]
    %v42 = vld [vmem:[%s0 + $0x8] sm:$0xf]
    %v43 = vld [vmem:[%s0 + $0x10] sm:$0xff]
    %v44 = vld [vmem:[%s0 + $0x18] sm:$0xf]
    %46 = vset.pattern.permute.xlu0 0
    %47 = vperm.xlu0 %46, %v38
    %v48 = vpop.permute.xlu0 %47
    %v54 = vunpack.c.l.b16 %v41
    %v55 = vunpack.c.h.b16 %v41
    %v56 = vunpack.c.l.b16 %v42
    %v57 = vunpack.c.l.b16 %v43
    %v58 = vunpack.c.h.b16 %v43
    %v59 = vunpack.c.l.b16 %v44
    %v60 = vpack.c.b16 %v57, %v54
    %v61 = vpack.c.b16 %v58, %v55
    %v62 = vpack.c.b16 %v59, %v56
    %vm66 = vcmask 130048
    %v68 = vsel %vm66, %v40, 0
    %70 = vmatprep.subr.bf16.mxu0 0
    %71 = vmatpush1.bf16.msra.mxu0 0
    %72 = vmatprep.subr.bf16.mxu0 0
    %73 = vmatpush1.bf16.msra.mxu0 0
    %74 = vmatprep.subr.bf16.mxu0 0
    %75 = vmatpush1.bf16.msra.mxu0 0
    %76 = vmatprep.subr.bf16.mxu0 0
    %77 = vmatpush1.bf16.msra.mxu0 0
    %78 = vmatprep.subr.bf16.mxu0 0
    %79 = vmatpush1.bf16.msra.mxu0 0
    %80 = vmatprep.subr.bf16.mxu0 0
    %81 = vmatpush1.bf16.msra.mxu0 0
    %82 = vmatprep.subr.bf16.mxu0 0
    %83 = vmatpush1.bf16.msra.mxu0 0
    %84 = vmatprep.subr.bf16.mxu0 %v61
    %85 = vmatpush1.bf16.msra.mxu0 %v60
    %86 = vmatprep.subr.bf16.mxu0 0
    %87 = vmatpush2.bf16.msra.mxu0 0
    %88 = vmatprep.subr.bf16.mxu0 0
    %89 = vmatpush2.bf16.msra.mxu0 0
    %90 = vmatprep.subr.bf16.mxu0 0
    %91 = vmatpush2.bf16.msra.mxu0 0
    %92 = vmatprep.subr.bf16.mxu0 0
    %93 = vmatpush2.bf16.msra.mxu0 0
    %94 = vmatprep.subr.bf16.mxu0 0
    %95 = vmatpush2.bf16.msra.mxu0 0
    %96 = vmatprep.subr.bf16.mxu0 0
    %97 = vmatpush2.bf16.msra.mxu0 0
    %98 = vmatprep.subr.bf16.mxu0 0
    %99 = vmatpush2.bf16.msra.mxu0 0
    %100 = vmatprep.subr.bf16.mxu0 0
    %101 = vmatpush2.bf16.msra.mxu0 0
    %102 = vmatprep.mubr.bf16.mxu0 0
    %103 = vmatmul.mubr.bf16.gmra.mxu0 %v68
    %v104 = vpop.f32.mrf.mxu0
    %v105 = vadd.f32 %v48, %v104
    %v106 = vpop.f32.mrf.mxu0
    %v107 = vadd.f32 %v48, %v106
    %v108 = vpop.f32.mrf.mxu0
    %v109 = vpop.f32.mrf.mxu0
    %110 = vdwg.mxu0
    %111 = vmatprep.subr.bf16.mxu0 0
    %112 = vmatpush1.bf16.msra.mxu0 0
    %113 = vmatprep.subr.bf16.mxu0 0
    %114 = vmatpush1.bf16.msra.mxu0 0
    %115 = vmatprep.subr.bf16.mxu0 0
    %116 = vmatpush1.bf16.msra.mxu0 0
    %117 = vmatprep.subr.bf16.mxu0 0
    %118 = vmatpush1.bf16.msra.mxu0 0
    %119 = vmatprep.subr.bf16.mxu0 0
    %120 = vmatpush1.bf16.msra.mxu0 0
    %121 = vmatprep.subr.bf16.mxu0 0
    %122 = vmatpush1.bf16.msra.mxu0 0
    %123 = vmatprep.subr.bf16.mxu0 0
    %124 = vmatpush1.bf16.msra.mxu0 0
    %125 = vmatprep.subr.bf16.mxu0 0
    %126 = vmatpush1.bf16.msra.mxu0 %v62
    %127 = vmatprep.subr.bf16.mxu0 0
    %128 = vmatpush2.bf16.msra.mxu0 0
    %129 = vmatprep.subr.bf16.mxu0 0
    %130 = vmatpush2.bf16.msra.mxu0 0
    %131 = vmatprep.subr.bf16.mxu0 0
    %132 = vmatpush2.bf16.msra.mxu0 0
    %133 = vmatprep.subr.bf16.mxu0 0
    %134 = vmatpush2.bf16.msra.mxu0 0
    %135 = vmatprep.subr.bf16.mxu0 0
    %136 = vmatpush2.bf16.msra.mxu0 0
    %137 = vmatprep.subr.bf16.mxu0 0
    %138 = vmatpush2.bf16.msra.mxu0 0
    %139 = vmatprep.subr.bf16.mxu0 0
    %140 = vmatpush2.bf16.msra.mxu0 0
    %141 = vmatprep.subr.bf16.mxu0 0
    %142 = vmatpush2.bf16.msra.mxu0 0
    %143 = vmatprep.mubr.bf16.mxu0 0
    %144 = vmatmul.mubr.bf16.gmra.mxu0 %v68
    %v145 = vpop.f32.mrf.mxu0
    %v146 = vadd.f32 %v48, %v145
    %v147 = vpop.f32.mrf.mxu0
    %v148 = vpop.f32.mrf.mxu0
    %v149 = vpop.f32.mrf.mxu0
    %150 = vdwg.mxu0
    %v152 = vlaneseq
    %v153 = vshrl.u32 %v152, 7
    %v154 = vsub.s32 0, %v153
    %v155 = vrot.slane %v39, %v154
    %v156 = vlaneseq
    %v157 = vshrl.u32 %v156, 7
    %v158 = vsub.s32 1, %v157
    %v159 = vrot.slane %v39, %v158
    %v160 = vlaneseq
    %v161 = vshrl.u32 %v160, 7
    %v162 = vsub.s32 2, %v161
    %v163 = vrot.slane %v39, %v162
    %v167 = vmul.f32 %v105, %v155
    %v168 = vmul.f32 %v107, %v159
    %v169 = vmul.f32 %v146, %v163
    %v170 = vadd.f32 %v167, 0.0
    %v171 = vadd.f32 %v168, 0.0
    %v172 = vadd.f32 %v169, 0.0
    %v173 = vmul.f32 %v167, %v167
    %v174 = vmul.f32 %v168, %v168
    %v175 = vmul.f32 %v169, %v169
    %v176 = vadd.f32 %v173, 0.0
    %v177 = vadd.f32 %v174, 0.0
    %v178 = vadd.f32 %v175, 0.0
    %179 = vst [vmem:[#allocation2] sm:$0xff] %v167
    %180 = vst [vmem:[#allocation2 + $0x8] sm:$0xff] %v168
    %181 = vst [vmem:[#allocation2 + $0x10] sm:$0xff] %v169
    %v182 = vld [vmem:[%s1] sm:$0xf]
    %s183 = scalar_lea.vmem %s0, 32
    %v184 = vld [vmem:[%s183] sm:$0xff]
    %v185 = vld [vmem:[%s183 + $0x8] sm:$0xf]
    %v186 = vld [vmem:[%s183 + $0x10] sm:$0xff]
    %v187 = vld [vmem:[%s183 + $0x18] sm:$0xf]
    %v192 = vunpack.c.l.b16 %v184
    %v193 = vunpack.c.h.b16 %v184
    %v194 = vunpack.c.l.b16 %v185
    %v195 = vunpack.c.l.b16 %v186
    %v196 = vunpack.c.h.b16 %v186
    %v197 = vunpack.c.l.b16 %v187
    %v198 = vpack.c.b16 %v195, %v192
    %v199 = vpack.c.b16 %v196, %v193
    %v200 = vpack.c.b16 %v197, %v194
    %v205 = vsel %vm66, %v182, 0
    %207 = vmatprep.subr.bf16.mxu0 0
    %208 = vmatpush1.bf16.msra.mxu0 0
    %209 = vmatprep.subr.bf16.mxu0 0
    %210 = vmatpush1.bf16.msra.mxu0 0
    %211 = vmatprep.subr.bf16.mxu0 0
    %212 = vmatpush1.bf16.msra.mxu0 0
    %213 = vmatprep.subr.bf16.mxu0 0
    %214 = vmatpush1.bf16.msra.mxu0 0
    %215 = vmatprep.subr.bf16.mxu0 0
    %216 = vmatpush1.bf16.msra.mxu0 0
    %217 = vmatprep.subr.bf16.mxu0 0
    %218 = vmatpush1.bf16.msra.mxu0 0
    %219 = vmatprep.subr.bf16.mxu0 0
    %220 = vmatpush1.bf16.msra.mxu0 0
    %221 = vmatprep.subr.bf16.mxu0 %v199
    %222 = vmatpush1.bf16.msra.mxu0 %v198
    %223 = vmatprep.subr.bf16.mxu0 0
    %224 = vmatpush2.bf16.msra.mxu0 0
    %225 = vmatprep.subr.bf16.mxu0 0
    %226 = vmatpush2.bf16.msra.mxu0 0
    %227 = vmatprep.subr.bf16.mxu0 0
    %228 = vmatpush2.bf16.msra.mxu0 0
    %229 = vmatprep.subr.bf16.mxu0 0
    %230 = vmatpush2.bf16.msra.mxu0 0
    %231 = vmatprep.subr.bf16.mxu0 0
    %232 = vmatpush2.bf16.msra.mxu0 0
    %233 = vmatprep.subr.bf16.mxu0 0
    %234 = vmatpush2.bf16.msra.mxu0 0
    %235 = vmatprep.subr.bf16.mxu0 0
    %236 = vmatpush2.bf16.msra.mxu0 0
    %237 = vmatprep.subr.bf16.mxu0 0
    %238 = vmatpush2.bf16.msra.mxu0 0
    %239 = vmatprep.mubr.bf16.mxu0 0
    %240 = vmatmul.mubr.bf16.gmra.mxu0 %v205
    %v241 = vpop.f32.mrf.mxu0
    %v242 = vadd.f32 %v48, %v241
    %v243 = vpop.f32.mrf.mxu0
    %v244 = vadd.f32 %v48, %v243
    %v245 = vpop.f32.mrf.mxu0
    %v246 = vpop.f32.mrf.mxu0
    %247 = vdwg.mxu0
    %248 = vmatprep.subr.bf16.mxu0 0
    %249 = vmatpush1.bf16.msra.mxu0 0
    %250 = vmatprep.subr.bf16.mxu0 0
    %251 = vmatpush1.bf16.msra.mxu0 0
    %252 = vmatprep.subr.bf16.mxu0 0
    %253 = vmatpush1.bf16.msra.mxu0 0
    %254 = vmatprep.subr.bf16.mxu0 0
    %255 = vmatpush1.bf16.msra.mxu0 0
    %256 = vmatprep.subr.bf16.mxu0 0
    %257 = vmatpush1.bf16.msra.mxu0 0
    %258 = vmatprep.subr.bf16.mxu0 0
    %259 = vmatpush1.bf16.msra.mxu0 0
    %260 = vmatprep.subr.bf16.mxu0 0
    %261 = vmatpush1.bf16.msra.mxu0 0
    %262 = vmatprep.subr.bf16.mxu0 0
    %263 = vmatpush1.bf16.msra.mxu0 %v200
    %264 = vmatprep.subr.bf16.mxu0 0
    %265 = vmatpush2.bf16.msra.mxu0 0
    %266 = vmatprep.subr.bf16.mxu0 0
    %267 = vmatpush2.bf16.msra.mxu0 0
    %268 = vmatprep.subr.bf16.mxu0 0
    %269 = vmatpush2.bf16.msra.mxu0 0
    %270 = vmatprep.subr.bf16.mxu0 0
    %271 = vmatpush2.bf16.msra.mxu0 0
    %272 = vmatprep.subr.bf16.mxu0 0
    %273 = vmatpush2.bf16.msra.mxu0 0
    %274 = vmatprep.subr.bf16.mxu0 0
    %275 = vmatpush2.bf16.msra.mxu0 0
    %276 = vmatprep.subr.bf16.mxu0 0
    %277 = vmatpush2.bf16.msra.mxu0 0
    %278 = vmatprep.subr.bf16.mxu0 0
    %279 = vmatpush2.bf16.msra.mxu0 0
    %280 = vmatprep.mubr.bf16.mxu0 0
    %281 = vmatmul.mubr.bf16.gmra.mxu0 %v205
    %v282 = vpop.f32.mrf.mxu0
    %v283 = vadd.f32 %v48, %v282
    %v284 = vpop.f32.mrf.mxu0
    %v285 = vpop.f32.mrf.mxu0
    %v286 = vpop.f32.mrf.mxu0
    %287 = vdwg.mxu0
    %v288 = vmul.f32 %v242, %v155
    %v289 = vmul.f32 %v244, %v159
    %v290 = vmul.f32 %v283, %v163
    %v291 = vadd.f32 %v170, %v288
    %v292 = vadd.f32 %v171, %v289
    %v293 = vadd.f32 %v172, %v290
    %v294 = vmul.f32 %v288, %v288
    %v295 = vmul.f32 %v289, %v289
    %v296 = vmul.f32 %v290, %v290
    %v297 = vadd.f32 %v176, %v294
    %v298 = vadd.f32 %v177, %v295
    %v299 = vadd.f32 %v178, %v296
    %s300 = scalar_lea.vmem [#allocation2], 24
    %301 = vst [vmem:[%s300] sm:$0xff] %v288
    %302 = vst [vmem:[%s300 + $0x8] sm:$0xff] %v289
    %303 = vst [vmem:[%s300 + $0x10] sm:$0xff] %v290
    %s304 = scalar_lea.vmem [#allocation3], 3
    %v305 = vld [vmem:[%s304] sm:$0x7]
    %v306 = vld [vmem:[%s1] sm:$0xf]
    %v307 = vld [vmem:[%s0] sm:$0xff]
    %v308 = vld [vmem:[%s0 + $0x8] sm:$0xff]
    %v309 = vld [vmem:[%s0 + $0x10] sm:$0xff]
    %v310 = vld [vmem:[%s0 + $0x18] sm:$0xff]
    %v311 = vld [vmem:[%s0 + $0x8] sm:$0xf]
    %v312 = vld [vmem:[%s0 + $0x18] sm:$0xf]
    %v317 = vunpack.c.l.b16 %v307
    %v318 = vunpack.c.h.b16 %v307
    %v319 = vunpack.c.l.b16 %v308
    %v320 = vunpack.c.h.b16 %v308
    %v321 = vunpack.c.l.b16 %v309
    %v322 = vunpack.c.h.b16 %v309
    %v323 = vunpack.c.l.b16 %v310
    %v324 = vunpack.c.h.b16 %v310
    %v325 = vpack.c.b16 %v321, %v317
    %v326 = vpack.c.b16 %v322, %v318
    %v327 = vpack.c.b16 %v323, %v319
    %v328 = vpack.c.b16 %v324, %v320
    %v331 = vunpack.c.l.b16 %v311
    %v332 = vunpack.c.l.b16 %v312
    %v333 = vpack.c.b16 %v332, %v331
    %334 = vrot.lane.b32.xlu0 %v325, 1
    %v335 = vpop.permute.xlu0 %334
    %336 = vrot.lane.b32.xlu0 %v326, 1
    %v337 = vpop.permute.xlu0 %336
    %338 = vrot.lane.b32.xlu0 %v333, 1
    %v339 = vpop.permute.xlu0 %338
    %vm340 = vcmask 7168
    %v341 = vsel %vm340, %v335, %v337
    %v342 = vsel %vm340, %v337, %v339
    %v344 = vunpack.c.l.b16 %v306
    %v345 = vpack.c.b16 %v344, %v344
    %346 = vrot.lane.b32.xlu0 %v345, 112
    %v347 = vpop.permute.xlu0 %346
    %348 = vrot.lane.b32.xlu0 %v325, 127
    %v349 = vpop.permute.xlu0 %348
    %350 = vrot.lane.b32.xlu0 %v326, 127
    %v351 = vpop.permute.xlu0 %350
    %352 = vrot.lane.b32.xlu0 %v327, 127
    %v353 = vpop.permute.xlu0 %352
    %354 = vrot.lane.b32.xlu0 %v328, 127
    %v355 = vpop.permute.xlu0 %354
    %356 = vrot.lane.b32.xlu0 %v335, 127
    %v357 = vpop.permute.xlu0 %356
    %358 = vrot.lane.b32.xlu0 %v341, 127
    %v359 = vpop.permute.xlu0 %358
    %360 = vrot.lane.b32.xlu0 %v342, 127
    %v361 = vpop.permute.xlu0 %360
    %362 = vrot.lane.b32.xlu0 %v339, 127
    %v363 = vpop.permute.xlu0 %362
    %vm364 = vcmask 1039360
    %v365 = vsel %vm364, %v349, %v351
    %v366 = vsel %vm364, %v351, %v353
    %v367 = vsel %vm364, %v353, %v355
    %v368 = vsel %vm364, %v357, %v359
    %v369 = vsel %vm364, %v359, %v361
    %v370 = vsel %vm364, %v361, %v363
    %vm377 = vcmask 261120
    %v379 = vsel %vm377, %v347, 0
    %381 = vmatprep.subr.bf16.mxu0 0
    %382 = vmatpush1.bf16.msra.mxu0 0
    %383 = vmatprep.subr.bf16.mxu0 0
    %384 = vmatpush1.bf16.msra.mxu0 0
    %385 = vmatprep.subr.bf16.mxu0 0
    %386 = vmatpush1.bf16.msra.mxu0 0
    %387 = vmatprep.subr.bf16.mxu0 0
    %388 = vmatpush1.bf16.msra.mxu0 0
    %389 = vmatprep.subr.bf16.mxu0 0
    %390 = vmatpush1.bf16.msra.mxu0 0
    %391 = vmatprep.subr.bf16.mxu0 0
    %392 = vmatpush1.bf16.msra.mxu0 0
    %393 = vmatprep.subr.bf16.mxu0 %v369
    %394 = vmatpush1.bf16.msra.mxu0 %v368
    %395 = vmatprep.subr.bf16.mxu0 %v366
    %396 = vmatpush1.bf16.msra.mxu0 %v365
    %397 = vmatprep.subr.bf16.mxu0 0
    %398 = vmatpush2.bf16.msra.mxu0 0
    %399 = vmatprep.subr.bf16.mxu0 0
    %400 = vmatpush2.bf16.msra.mxu0 0
    %401 = vmatprep.subr.bf16.mxu0 0
    %402 = vmatpush2.bf16.msra.mxu0 0
    %403 = vmatprep.subr.bf16.mxu0 0
    %404 = vmatpush2.bf16.msra.mxu0 0
    %405 = vmatprep.subr.bf16.mxu0 0
    %406 = vmatpush2.bf16.msra.mxu0 0
    %407 = vmatprep.subr.bf16.mxu0 0
    %408 = vmatpush2.bf16.msra.mxu0 0
    %409 = vmatprep.subr.bf16.mxu0 0
    %410 = vmatpush2.bf16.msra.mxu0 0
    %411 = vmatprep.subr.bf16.mxu0 0
    %412 = vmatpush2.bf16.msra.mxu0 0
    %413 = vmatprep.mubr.bf16.mxu0 0
    %414 = vmatmul.mubr.bf16.gmra.mxu0 %v379
    %v415 = vpop.f32.mrf.mxu0
    %v416 = vadd.f32 %v48, %v415
    %v417 = vpop.f32.mrf.mxu0
    %v418 = vadd.f32 %v48, %v417
    %v419 = vpop.f32.mrf.mxu0
    %v420 = vpop.f32.mrf.mxu0
    %421 = vdwg.mxu0
    %422 = vmatprep.subr.bf16.mxu0 0
    %423 = vmatpush1.bf16.msra.mxu0 0
    %424 = vmatprep.subr.bf16.mxu0 0
    %425 = vmatpush1.bf16.msra.mxu0 0
    %426 = vmatprep.subr.bf16.mxu0 0
    %427 = vmatpush1.bf16.msra.mxu0 0
    %428 = vmatprep.subr.bf16.mxu0 0
    %429 = vmatpush1.bf16.msra.mxu0 0
    %430 = vmatprep.subr.bf16.mxu0 0
    %431 = vmatpush1.bf16.msra.mxu0 0
    %432 = vmatprep.subr.bf16.mxu0 0
    %433 = vmatpush1.bf16.msra.mxu0 0
    %434 = vmatprep.subr.bf16.mxu0 0
    %435 = vmatpush1.bf16.msra.mxu0 %v370
    %436 = vmatprep.subr.bf16.mxu0 0
    %437 = vmatpush1.bf16.msra.mxu0 %v367
    %438 = vmatprep.subr.bf16.mxu0 0
    %439 = vmatpush2.bf16.msra.mxu0 0
    %440 = vmatprep.subr.bf16.mxu0 0
    %441 = vmatpush2.bf16.msra.mxu0 0
    %442 = vmatprep.subr.bf16.mxu0 0
    %443 = vmatpush2.bf16.msra.mxu0 0
    %444 = vmatprep.subr.bf16.mxu0 0
    %445 = vmatpush2.bf16.msra.mxu0 0
    %446 = vmatprep.subr.bf16.mxu0 0
    %447 = vmatpush2.bf16.msra.mxu0 0
    %448 = vmatprep.subr.bf16.mxu0 0
    %449 = vmatpush2.bf16.msra.mxu0 0
    %450 = vmatprep.subr.bf16.mxu0 0
    %451 = vmatpush2.bf16.msra.mxu0 0
    %452 = vmatprep.subr.bf16.mxu0 0
    %453 = vmatpush2.bf16.msra.mxu0 0
    %454 = vmatprep.mubr.bf16.mxu0 0
    %455 = vmatmul.mubr.bf16.gmra.mxu0 %v379
    %v456 = vpop.f32.mrf.mxu0
    %v457 = vadd.f32 %v48, %v456
    %v458 = vpop.f32.mrf.mxu0
    %v459 = vpop.f32.mrf.mxu0
    %v460 = vpop.f32.mrf.mxu0
    %461 = vdwg.mxu0
    %v463 = vlaneseq
    %v464 = vshrl.u32 %v463, 7
    %v465 = vsub.s32 0, %v464
    %v466 = vrot.slane %v305, %v465
    %v467 = vlaneseq
    %v468 = vshrl.u32 %v467, 7
    %v469 = vsub.s32 1, %v468
    %v470 = vrot.slane %v305, %v469
    %v471 = vlaneseq
    %v472 = vshrl.u32 %v471, 7
    %v473 = vsub.s32 2, %v472
    %v474 = vrot.slane %v305, %v473
    %v478 = vmul.f32 %v416, %v466
    %v479 = vmul.f32 %v418, %v470
    %v480 = vmul.f32 %v457, %v474
    %v481 = vadd.f32 %v291, %v478
    %v482 = vadd.f32 %v292, %v479
    %v483 = vadd.f32 %v293, %v480
    %v484 = vmul.f32 %v478, %v478
    %v485 = vmul.f32 %v479, %v479
    %v486 = vmul.f32 %v480, %v480
    %v487 = vadd.f32 %v297, %v484
    %v488 = vadd.f32 %v298, %v485
    %v489 = vadd.f32 %v299, %v486
    %s490 = scalar_lea.vmem [#allocation2], 48
    %491 = vst [vmem:[%s490] sm:$0xff] %v478
    %492 = vst [vmem:[%s490 + $0x8] sm:$0xff] %v479
    %493 = vst [vmem:[%s490 + $0x10] sm:$0xff] %v480
    %v494 = vld [vmem:[%s1] sm:$0xf]
    %v495 = vld [vmem:[%s183] sm:$0xff]
    %v496 = vld [vmem:[%s183 + $0x8] sm:$0xff]
    %v497 = vld [vmem:[%s183 + $0x10] sm:$0xff]
    %v498 = vld [vmem:[%s183 + $0x18] sm:$0xff]
    %v499 = vld [vmem:[%s183 + $0x8] sm:$0xf]
    %v500 = vld [vmem:[%s183 + $0x18] sm:$0xf]
    %v505 = vunpack.c.l.b16 %v495
    %v506 = vunpack.c.h.b16 %v495
    %v507 = vunpack.c.l.b16 %v496
    %v508 = vunpack.c.h.b16 %v496
    %v509 = vunpack.c.l.b16 %v497
    %v510 = vunpack.c.h.b16 %v497
    %v511 = vunpack.c.l.b16 %v498
    %v512 = vunpack.c.h.b16 %v498
    %v513 = vpack.c.b16 %v509, %v505
    %v514 = vpack.c.b16 %v510, %v506
    %v515 = vpack.c.b16 %v511, %v507
    %v516 = vpack.c.b16 %v512, %v508
    %v519 = vunpack.c.l.b16 %v499
    %v520 = vunpack.c.l.b16 %v500
    %v521 = vpack.c.b16 %v520, %v519
    %522 = vrot.lane.b32.xlu0 %v513, 1
    %v523 = vpop.permute.xlu0 %522
    %524 = vrot.lane.b32.xlu0 %v514, 1
    %v525 = vpop.permute.xlu0 %524
    %526 = vrot.lane.b32.xlu0 %v521, 1
    %v527 = vpop.permute.xlu0 %526
    %v528 = vsel %vm340, %v523, %v525
    %v529 = vsel %vm340, %v525, %v527
    %v531 = vunpack.c.l.b16 %v494
    %v532 = vpack.c.b16 %v531, %v531
    %533 = vrot.lane.b32.xlu0 %v532, 112
    %v534 = vpop.permute.xlu0 %533
    %535 = vrot.lane.b32.xlu0 %v513, 127
    %v536 = vpop.permute.xlu0 %535
    %537 = vrot.lane.b32.xlu0 %v514, 127
    %v538 = vpop.permute.xlu0 %537
    %539 = vrot.lane.b32.xlu0 %v515, 127
    %v540 = vpop.permute.xlu0 %539
    %541 = vrot.lane.b32.xlu0 %v516, 127
    %v542 = vpop.permute.xlu0 %541
    %543 = vrot.lane.b32.xlu0 %v523, 127
    %v544 = vpop.permute.xlu0 %543
    %545 = vrot.lane.b32.xlu0 %v528, 127
    %v546 = vpop.permute.xlu0 %545
    %547 = vrot.lane.b32.xlu0 %v529, 127
    %v548 = vpop.permute.xlu0 %547
    %549 = vrot.lane.b32.xlu0 %v527, 127
    %v550 = vpop.permute.xlu0 %549
    %v551 = vsel %vm364, %v536, %v538
    %v552 = vsel %vm364, %v538, %v540
    %v553 = vsel %vm364, %v540, %v542
    %v554 = vsel %vm364, %v544, %v546
    %v555 = vsel %vm364, %v546, %v548
    %v556 = vsel %vm364, %v548, %v550
    %v564 = vsel %vm377, %v534, 0
    %566 = vmatprep.subr.bf16.mxu0 0
    %567 = vmatpush1.bf16.msra.mxu0 0
    %568 = vmatprep.subr.bf16.mxu0 0
    %569 = vmatpush1.bf16.msra.mxu0 0
    %570 = vmatprep.subr.bf16.mxu0 0
    %571 = vmatpush1.bf16.msra.mxu0 0
    %572 = vmatprep.subr.bf16.mxu0 0
    %573 = vmatpush1.bf16.msra.mxu0 0
    %574 = vmatprep.subr.bf16.mxu0 0
    %575 = vmatpush1.bf16.msra.mxu0 0
    %576 = vmatprep.subr.bf16.mxu0 0
    %577 = vmatpush1.bf16.msra.mxu0 0
    %578 = vmatprep.subr.bf16.mxu0 %v555
    %579 = vmatpush1.bf16.msra.mxu0 %v554
    %580 = vmatprep.subr.bf16.mxu0 %v552
    %581 = vmatpush1.bf16.msra.mxu0 %v551
    %582 = vmatprep.subr.bf16.mxu0 0
    %583 = vmatpush2.bf16.msra.mxu0 0
    %584 = vmatprep.subr.bf16.mxu0 0
    %585 = vmatpush2.bf16.msra.mxu0 0
    %586 = vmatprep.subr.bf16.mxu0 0
    %587 = vmatpush2.bf16.msra.mxu0 0
    %588 = vmatprep.subr.bf16.mxu0 0
    %589 = vmatpush2.bf16.msra.mxu0 0
    %590 = vmatprep.subr.bf16.mxu0 0
    %591 = vmatpush2.bf16.msra.mxu0 0
    %592 = vmatprep.subr.bf16.mxu0 0
    %593 = vmatpush2.bf16.msra.mxu0 0
    %594 = vmatprep.subr.bf16.mxu0 0
    %595 = vmatpush2.bf16.msra.mxu0 0
    %596 = vmatprep.subr.bf16.mxu0 0
    %597 = vmatpush2.bf16.msra.mxu0 0
    %598 = vmatprep.mubr.bf16.mxu0 0
    %599 = vmatmul.mubr.bf16.gmra.mxu0 %v564
    %v600 = vpop.f32.mrf.mxu0
    %v601 = vadd.f32 %v48, %v600
    %v602 = vpop.f32.mrf.mxu0
    %v603 = vadd.f32 %v48, %v602
    %v604 = vpop.f32.mrf.mxu0
    %v605 = vpop.f32.mrf.mxu0
    %606 = vdwg.mxu0
    %607 = vmatprep.subr.bf16.mxu0 0
    %608 = vmatpush1.bf16.msra.mxu0 0
    %609 = vmatprep.subr.bf16.mxu0 0
    %610 = vmatpush1.bf16.msra.mxu0 0
    %611 = vmatprep.subr.bf16.mxu0 0
    %612 = vmatpush1.bf16.msra.mxu0 0
    %613 = vmatprep.subr.bf16.mxu0 0
    %614 = vmatpush1.bf16.msra.mxu0 0
    %615 = vmatprep.subr.bf16.mxu0 0
    %616 = vmatpush1.bf16.msra.mxu0 0
    %617 = vmatprep.subr.bf16.mxu0 0
    %618 = vmatpush1.bf16.msra.mxu0 0
    %619 = vmatprep.subr.bf16.mxu0 0
    %620 = vmatpush1.bf16.msra.mxu0 %v556
    %621 = vmatprep.subr.bf16.mxu0 0
    %622 = vmatpush1.bf16.msra.mxu0 %v553
    %623 = vmatprep.subr.bf16.mxu0 0
    %624 = vmatpush2.bf16.msra.mxu0 0
    %625 = vmatprep.subr.bf16.mxu0 0
    %626 = vmatpush2.bf16.msra.mxu0 0
    %627 = vmatprep.subr.bf16.mxu0 0
    %628 = vmatpush2.bf16.msra.mxu0 0
    %629 = vmatprep.subr.bf16.mxu0 0
    %630 = vmatpush2.bf16.msra.mxu0 0
    %631 = vmatprep.subr.bf16.mxu0 0
    %632 = vmatpush2.bf16.msra.mxu0 0
    %633 = vmatprep.subr.bf16.mxu0 0
    %634 = vmatpush2.bf16.msra.mxu0 0
    %635 = vmatprep.subr.bf16.mxu0 0
    %636 = vmatpush2.bf16.msra.mxu0 0
    %637 = vmatprep.subr.bf16.mxu0 0
    %638 = vmatpush2.bf16.msra.mxu0 0
    %639 = vmatprep.mubr.bf16.mxu0 0
    %640 = vmatmul.mubr.bf16.gmra.mxu0 %v564
    %v641 = vpop.f32.mrf.mxu0
    %v642 = vadd.f32 %v48, %v641
    %v643 = vpop.f32.mrf.mxu0
    %v644 = vpop.f32.mrf.mxu0
    %v645 = vpop.f32.mrf.mxu0
    %646 = vdwg.mxu0
    %v647 = vmul.f32 %v601, %v466
    %v648 = vmul.f32 %v603, %v470
    %v649 = vmul.f32 %v642, %v474
    %v650 = vadd.f32 %v481, %v647
    %v651 = vadd.f32 %v482, %v648
    %v652 = vadd.f32 %v483, %v649
    %v653 = vmul.f32 %v647, %v647
    %v654 = vmul.f32 %v648, %v648
    %v655 = vmul.f32 %v649, %v649
    %v656 = vadd.f32 %v487, %v653
    %v657 = vadd.f32 %v488, %v654
    %v658 = vadd.f32 %v489, %v655
    %s659 = scalar_lea.vmem [#allocation2], 72
    %660 = vst [vmem:[%s659] sm:$0xff] %v647
    %661 = vst [vmem:[%s659 + $0x8] sm:$0xff] %v648
    %662 = vst [vmem:[%s659 + $0x10] sm:$0xff] %v649
    %s663 = scalar_lea.vmem [#allocation3], 6
    %v664 = vld [vmem:[%s663] sm:$0x7]
    %v665 = vld [vmem:[%s1] sm:$0xf]
    %v666 = vld [vmem:[%s0] sm:$0xff]
    %v667 = vld [vmem:[%s0 + $0x8] sm:$0xff]
    %v668 = vld [vmem:[%s0 + $0x10] sm:$0xff]
    %v669 = vld [vmem:[%s0 + $0x18] sm:$0xff]
    %v670 = vld [vmem:[%s0 + $0x8] sm:$0xf]
    %v671 = vld [vmem:[%s0 + $0x18] sm:$0xf]
    %v676 = vunpack.c.l.b16 %v666
    %v677 = vunpack.c.h.b16 %v666
    %v678 = vunpack.c.l.b16 %v667
    %v679 = vunpack.c.h.b16 %v667
    %v680 = vunpack.c.l.b16 %v668
    %v681 = vunpack.c.h.b16 %v668
    %v682 = vunpack.c.l.b16 %v669
    %v683 = vunpack.c.h.b16 %v669
    %v684 = vpack.c.b16 %v680, %v676
    %v685 = vpack.c.b16 %v681, %v677
    %v686 = vpack.c.b16 %v682, %v678
    %v687 = vpack.c.b16 %v683, %v679
    %v690 = vunpack.c.l.b16 %v670
    %v691 = vunpack.c.l.b16 %v671
    %v692 = vpack.c.b16 %v691, %v690
    %693 = vrot.lane.b32.xlu0 %v684, 17
    %v694 = vpop.permute.xlu0 %693
    %695 = vrot.lane.b32.xlu0 %v685, 17
    %v696 = vpop.permute.xlu0 %695
    %697 = vrot.lane.b32.xlu0 %v692, 17
    %v698 = vpop.permute.xlu0 %697
    %vm699 = vcmask 138240
    %v700 = vsel %vm699, %v694, %v696
    %v701 = vsel %vm699, %v696, %v698
    %v703 = vunpack.c.l.b16 %v665
    %v704 = vpack.c.b16 %v703, %v703
    %705 = vrot.lane.b32.xlu0 %v704, 80
    %v706 = vpop.permute.xlu0 %705
    %707 = vrot.lane.b32.xlu0 %v684, 111
    %v708 = vpop.permute.xlu0 %707
    %709 = vrot.lane.b32.xlu0 %v685, 111
    %v710 = vpop.permute.xlu0 %709
    %711 = vrot.lane.b32.xlu0 %v686, 111
    %v712 = vpop.permute.xlu0 %711
    %713 = vrot.lane.b32.xlu0 %v687, 111
    %v714 = vpop.permute.xlu0 %713
    %715 = vrot.lane.b32.xlu0 %v694, 111
    %v716 = vpop.permute.xlu0 %715
    %717 = vrot.lane.b32.xlu0 %v700, 111
    %v718 = vpop.permute.xlu0 %717
    %719 = vrot.lane.b32.xlu0 %v701, 111
    %v720 = vpop.permute.xlu0 %719
    %721 = vrot.lane.b32.xlu0 %v698, 111
    %v722 = vpop.permute.xlu0 %721
    %vm723 = vcmask 908288
    %v724 = vsel %vm723, %v708, %v710
    %v725 = vsel %vm723, %v710, %v712
    %v726 = vsel %vm723, %v712, %v714
    %v727 = vsel %vm723, %v716, %v718
    %v728 = vsel %vm723, %v718, %v720
    %v729 = vsel %vm723, %v720, %v722
    %v737 = vsel %vm377, %v706, 0
    %739 = vmatprep.subr.bf16.mxu0 0
    %740 = vmatpush1.bf16.msra.mxu0 0
    %741 = vmatprep.subr.bf16.mxu0 0
    %742 = vmatpush1.bf16.msra.mxu0 0
    %743 = vmatprep.subr.bf16.mxu0 0
    %744 = vmatpush1.bf16.msra.mxu0 0
    %745 = vmatprep.subr.bf16.mxu0 0
    %746 = vmatpush1.bf16.msra.mxu0 0
    %747 = vmatprep.subr.bf16.mxu0 0
    %748 = vmatpush1.bf16.msra.mxu0 0
    %749 = vmatprep.subr.bf16.mxu0 0
    %750 = vmatpush1.bf16.msra.mxu0 0
    %751 = vmatprep.subr.bf16.mxu0 %v728
    %752 = vmatpush1.bf16.msra.mxu0 %v727
    %753 = vmatprep.subr.bf16.mxu0 %v725
    %754 = vmatpush1.bf16.msra.mxu0 %v724
    %755 = vmatprep.subr.bf16.mxu0 0
    %756 = vmatpush2.bf16.msra.mxu0 0
    %757 = vmatprep.subr.bf16.mxu0 0
    %758 = vmatpush2.bf16.msra.mxu0 0
    %759 = vmatprep.subr.bf16.mxu0 0
    %760 = vmatpush2.bf16.msra.mxu0 0
    %761 = vmatprep.subr.bf16.mxu0 0
    %762 = vmatpush2.bf16.msra.mxu0 0
    %763 = vmatprep.subr.bf16.mxu0 0
    %764 = vmatpush2.bf16.msra.mxu0 0
    %765 = vmatprep.subr.bf16.mxu0 0
    %766 = vmatpush2.bf16.msra.mxu0 0
    %767 = vmatprep.subr.bf16.mxu0 0
    %768 = vmatpush2.bf16.msra.mxu0 0
    %769 = vmatprep.subr.bf16.mxu0 0
    %770 = vmatpush2.bf16.msra.mxu0 0
    %771 = vmatprep.mubr.bf16.mxu0 0
    %772 = vmatmul.mubr.bf16.gmra.mxu0 %v737
    %v773 = vpop.f32.mrf.mxu0
    %v774 = vadd.f32 %v48, %v773
    %v775 = vpop.f32.mrf.mxu0
    %v776 = vadd.f32 %v48, %v775
    %v777 = vpop.f32.mrf.mxu0
    %v778 = vpop.f32.mrf.mxu0
    %779 = vdwg.mxu0
    %780 = vmatprep.subr.bf16.mxu0 0
    %781 = vmatpush1.bf16.msra.mxu0 0
    %782 = vmatprep.subr.bf16.mxu0 0
    %783 = vmatpush1.bf16.msra.mxu0 0
    %784 = vmatprep.subr.bf16.mxu0 0
    %785 = vmatpush1.bf16.msra.mxu0 0
    %786 = vmatprep.subr.bf16.mxu0 0
    %787 = vmatpush1.bf16.msra.mxu0 0
    %788 = vmatprep.subr.bf16.mxu0 0
    %789 = vmatpush1.bf16.msra.mxu0 0
    %790 = vmatprep.subr.bf16.mxu0 0
    %791 = vmatpush1.bf16.msra.mxu0 0
    %792 = vmatprep.subr.bf16.mxu0 0
    %793 = vmatpush1.bf16.msra.mxu0 %v729
    %794 = vmatprep.subr.bf16.mxu0 0
    %795 = vmatpush1.bf16.msra.mxu0 %v726
    %796 = vmatprep.subr.bf16.mxu0 0
    %797 = vmatpush2.bf16.msra.mxu0 0
    %798 = vmatprep.subr.bf16.mxu0 0
    %799 = vmatpush2.bf16.msra.mxu0 0
    %800 = vmatprep.subr.bf16.mxu0 0
    %801 = vmatpush2.bf16.msra.mxu0 0
    %802 = vmatprep.subr.bf16.mxu0 0
    %803 = vmatpush2.bf16.msra.mxu0 0
    %804 = vmatprep.subr.bf16.mxu0 0
    %805 = vmatpush2.bf16.msra.mxu0 0
    %806 = vmatprep.subr.bf16.mxu0 0
    %807 = vmatpush2.bf16.msra.mxu0 0
    %808 = vmatprep.subr.bf16.mxu0 0
    %809 = vmatpush2.bf16.msra.mxu0 0
    %810 = vmatprep.subr.bf16.mxu0 0
    %811 = vmatpush2.bf16.msra.mxu0 0
    %812 = vmatprep.mubr.bf16.mxu0 0
    %813 = vmatmul.mubr.bf16.gmra.mxu0 %v737
    %v814 = vpop.f32.mrf.mxu0
    %v815 = vadd.f32 %v48, %v814
    %v816 = vpop.f32.mrf.mxu0
    %v817 = vpop.f32.mrf.mxu0
    %v818 = vpop.f32.mrf.mxu0
    %819 = vdwg.mxu0
    %v821 = vlaneseq
    %v822 = vshrl.u32 %v821, 7
    %v823 = vsub.s32 0, %v822
    %v824 = vrot.slane %v664, %v823
    %v825 = vlaneseq
    %v826 = vshrl.u32 %v825, 7
    %v827 = vsub.s32 1, %v826
    %v828 = vrot.slane %v664, %v827
    %v829 = vlaneseq
    %v830 = vshrl.u32 %v829, 7
    %v831 = vsub.s32 2, %v830
    %v832 = vrot.slane %v664, %v831
    %v836 = vmul.f32 %v774, %v824
    %v837 = vmul.f32 %v776, %v828
    %v838 = vmul.f32 %v815, %v832
    %v839 = vadd.f32 %v650, %v836
    %v840 = vadd.f32 %v651, %v837
    %v841 = vadd.f32 %v652, %v838
    %v842 = vmul.f32 %v836, %v836
    %v843 = vmul.f32 %v837, %v837
    %v844 = vmul.f32 %v838, %v838
    %v845 = vadd.f32 %v656, %v842
    %v846 = vadd.f32 %v657, %v843
    %v847 = vadd.f32 %v658, %v844
    %s848 = scalar_lea.vmem [#allocation2], 96
    %849 = vst [vmem:[%s848] sm:$0xff] %v836
    %850 = vst [vmem:[%s848 + $0x8] sm:$0xff] %v837
    %851 = vst [vmem:[%s848 + $0x10] sm:$0xff] %v838
    %v852 = vld [vmem:[%s1] sm:$0xf]
    %v853 = vld [vmem:[%s183] sm:$0xff]
    %v854 = vld [vmem:[%s183 + $0x8] sm:$0xff]
    %v855 = vld [vmem:[%s183 + $0x10] sm:$0xff]
    %v856 = vld [vmem:[%s183 + $0x18] sm:$0xff]
    %v857 = vld [vmem:[%s183 + $0x8] sm:$0xf]
    %v858 = vld [vmem:[%s183 + $0x18] sm:$0xf]
    %v863 = vunpack.c.l.b16 %v853
    %v864 = vunpack.c.h.b16 %v853
    %v865 = vunpack.c.l.b16 %v854
    %v866 = vunpack.c.h.b16 %v854
    %v867 = vunpack.c.l.b16 %v855
    %v868 = vunpack.c.h.b16 %v855
    %v869 = vunpack.c.l.b16 %v856
    %v870 = vunpack.c.h.b16 %v856
    %v871 = vpack.c.b16 %v867, %v863
    %v872 = vpack.c.b16 %v868, %v864
    %v873 = vpack.c.b16 %v869, %v865
    %v874 = vpack.c.b16 %v870, %v866
    %v877 = vunpack.c.l.b16 %v857
    %v878 = vunpack.c.l.b16 %v858
    %v879 = vpack.c.b16 %v878, %v877
    %880 = vrot.lane.b32.xlu0 %v871, 17
    %v881 = vpop.permute.xlu0 %880
    %882 = vrot.lane.b32.xlu0 %v872, 17
    %v883 = vpop.permute.xlu0 %882
    %884 = vrot.lane.b32.xlu0 %v879, 17
    %v885 = vpop.permute.xlu0 %884
    %v886 = vsel %vm699, %v881, %v883
    %v887 = vsel %vm699, %v883, %v885
    %v889 = vunpack.c.l.b16 %v852
    %v890 = vpack.c.b16 %v889, %v889
    %891 = vrot.lane.b32.xlu0 %v890, 80
    %v892 = vpop.permute.xlu0 %891
    %893 = vrot.lane.b32.xlu0 %v871, 111
    %v894 = vpop.permute.xlu0 %893
    %895 = vrot.lane.b32.xlu0 %v872, 111
    %v896 = vpop.permute.xlu0 %895
    %897 = vrot.lane.b32.xlu0 %v873, 111
    %v898 = vpop.permute.xlu0 %897
    %899 = vrot.lane.b32.xlu0 %v874, 111
    %v900 = vpop.permute.xlu0 %899
    %901 = vrot.lane.b32.xlu0 %v881, 111
    %v902 = vpop.permute.xlu0 %901
    %903 = vrot.lane.b32.xlu0 %v886, 111
    %v904 = vpop.permute.xlu0 %903
    %905 = vrot.lane.b32.xlu0 %v887, 111
    %v906 = vpop.permute.xlu0 %905
    %907 = vrot.lane.b32.xlu0 %v885, 111
    %v908 = vpop.permute.xlu0 %907
    %v909 = vsel %vm723, %v894, %v896
    %v910 = vsel %vm723, %v896, %v898
    %v911 = vsel %vm723, %v898, %v900
    %v912 = vsel %vm723, %v902, %v904
    %v913 = vsel %vm723, %v904, %v906
    %v914 = vsel %vm723, %v906, %v908
    %v922 = vsel %vm377, %v892, 0
    %924 = vmatprep.subr.bf16.mxu0 0
    %925 = vmatpush1.bf16.msra.mxu0 0
    %926 = vmatprep.subr.bf16.mxu0 0
    %927 = vmatpush1.bf16.msra.mxu0 0
    %928 = vmatprep.subr.bf16.mxu0 0
    %929 = vmatpush1.bf16.msra.mxu0 0
    %930 = vmatprep.subr.bf16.mxu0 0
    %931 = vmatpush1.bf16.msra.mxu0 0
    %932 = vmatprep.subr.bf16.mxu0 0
    %933 = vmatpush1.bf16.msra.mxu0 0
    %934 = vmatprep.subr.bf16.mxu0 0
    %935 = vmatpush1.bf16.msra.mxu0 0
    %936 = vmatprep.subr.bf16.mxu0 %v913
    %937 = vmatpush1.bf16.msra.mxu0 %v912
    %938 = vmatprep.subr.bf16.mxu0 %v910
    %939 = vmatpush1.bf16.msra.mxu0 %v909
    %940 = vmatprep.subr.bf16.mxu0 0
    %941 = vmatpush2.bf16.msra.mxu0 0
    %942 = vmatprep.subr.bf16.mxu0 0
    %943 = vmatpush2.bf16.msra.mxu0 0
    %944 = vmatprep.subr.bf16.mxu0 0
    %945 = vmatpush2.bf16.msra.mxu0 0
    %946 = vmatprep.subr.bf16.mxu0 0
    %947 = vmatpush2.bf16.msra.mxu0 0
    %948 = vmatprep.subr.bf16.mxu0 0
    %949 = vmatpush2.bf16.msra.mxu0 0
    %950 = vmatprep.subr.bf16.mxu0 0
    %951 = vmatpush2.bf16.msra.mxu0 0
    %952 = vmatprep.subr.bf16.mxu0 0
    %953 = vmatpush2.bf16.msra.mxu0 0
    %954 = vmatprep.subr.bf16.mxu0 0
    %955 = vmatpush2.bf16.msra.mxu0 0
    %956 = vmatprep.mubr.bf16.mxu0 0
    %957 = vmatmul.mubr.bf16.gmra.mxu0 %v922
    %v958 = vpop.f32.mrf.mxu0
    %v959 = vadd.f32 %v48, %v958
    %v960 = vpop.f32.mrf.mxu0
    %v961 = vadd.f32 %v48, %v960
    %v962 = vpop.f32.mrf.mxu0
    %v963 = vpop.f32.mrf.mxu0
    %964 = vdwg.mxu0
    %965 = vmatprep.subr.bf16.mxu0 0
    %966 = vmatpush1.bf16.msra.mxu0 0
    %967 = vmatprep.subr.bf16.mxu0 0
    %968 = vmatpush1.bf16.msra.mxu0 0
    %969 = vmatprep.subr.bf16.mxu0 0
    %970 = vmatpush1.bf16.msra.mxu0 0
    %971 = vmatprep.subr.bf16.mxu0 0
    %972 = vmatpush1.bf16.msra.mxu0 0
    %973 = vmatprep.subr.bf16.mxu0 0
    %974 = vmatpush1.bf16.msra.mxu0 0
    %975 = vmatprep.subr.bf16.mxu0 0
    %976 = vmatpush1.bf16.msra.mxu0 0
    %977 = vmatprep.subr.bf16.mxu0 0
    %978 = vmatpush1.bf16.msra.mxu0 %v914
    %979 = vmatprep.subr.bf16.mxu0 0
    %980 = vmatpush1.bf16.msra.mxu0 %v911
    %981 = vmatprep.subr.bf16.mxu0 0
    %982 = vmatpush2.bf16.msra.mxu0 0
    %983 = vmatprep.subr.bf16.mxu0 0
    %984 = vmatpush2.bf16.msra.mxu0 0
    %985 = vmatprep.subr.bf16.mxu0 0
    %986 = vmatpush2.bf16.msra.mxu0 0
    %987 = vmatprep.subr.bf16.mxu0 0
    %988 = vmatpush2.bf16.msra.mxu0 0
    %989 = vmatprep.subr.bf16.mxu0 0
    %990 = vmatpush2.bf16.msra.mxu0 0
    %991 = vmatprep.subr.bf16.mxu0 0
    %992 = vmatpush2.bf16.msra.mxu0 0
    %993 = vmatprep.subr.bf16.mxu0 0
    %994 = vmatpush2.bf16.msra.mxu0 0
    %995 = vmatprep.subr.bf16.mxu0 0
    %996 = vmatpush2.bf16.msra.mxu0 0
    %997 = vmatprep.mubr.bf16.mxu0 0
    %998 = vmatmul.mubr.bf16.gmra.mxu0 %v922
    %v999 = vpop.f32.mrf.mxu0
    %v1000 = vadd.f32 %v48, %v999
    %v1001 = vpop.f32.mrf.mxu0
    %v1002 = vpop.f32.mrf.mxu0
    %v1003 = vpop.f32.mrf.mxu0
    %1004 = vdwg.mxu0
    %v1005 = vmul.f32 %v959, %v824
    %v1006 = vmul.f32 %v961, %v828
    %v1007 = vmul.f32 %v1000, %v832
    %v1008 = vadd.f32 %v839, %v1005
    %v1009 = vadd.f32 %v840, %v1006
    %v1010 = vadd.f32 %v841, %v1007
    %v1011 = vmul.f32 %v1005, %v1005
    %v1012 = vmul.f32 %v1006, %v1006
    %v1013 = vmul.f32 %v1007, %v1007
    %v1014 = vadd.f32 %v845, %v1011
    %v1015 = vadd.f32 %v846, %v1012
    %v1016 = vadd.f32 %v847, %v1013
    %s1017 = scalar_lea.vmem [#allocation2], 120
    %1018 = vst [vmem:[%s1017] sm:$0xff] %v1005
    %1019 = vst [vmem:[%s1017 + $0x8] sm:$0xff] %v1006
    %1020 = vst [vmem:[%s1017 + $0x10] sm:$0xff] %v1007
    %s1021 = scalar_lea.vmem [#allocation3], 9
    %v1022 = vld [vmem:[%s1021] sm:$0x7]
    %v1023 = vld [vmem:[%s1] sm:$0xff]
    %v1024 = vld [vmem:[%s0] sm:$0xff]
    %v1025 = vld [vmem:[%s0 + $0x8] sm:$0xff]
    %v1026 = vld [vmem:[%s0 + $0x10] sm:$0xff]
    %v1027 = vld [vmem:[%s0 + $0x18] sm:$0xff]
    %v1028 = vld [vmem:[%s0 + $0x8] sm:$0xf]
    %v1029 = vld [vmem:[%s0 + $0x18] sm:$0xf]
    %v1034 = vunpack.c.l.b16 %v1024
    %v1035 = vunpack.c.h.b16 %v1024
    %v1036 = vunpack.c.l.b16 %v1025
    %v1037 = vunpack.c.h.b16 %v1025
    %v1038 = vunpack.c.l.b16 %v1026
    %v1039 = vunpack.c.h.b16 %v1026
    %v1040 = vunpack.c.l.b16 %v1027
    %v1041 = vunpack.c.h.b16 %v1027
    %v1042 = vpack.c.b16 %v1038, %v1034
    %v1043 = vpack.c.b16 %v1039, %v1035
    %v1044 = vpack.c.b16 %v1040, %v1036
    %v1045 = vpack.c.b16 %v1041, %v1037
    %1046 = vrot.lane.b32.xlu0 %v1042, 1
    %v1047 = vpop.permute.xlu0 %1046
    %1048 = vrot.lane.b32.xlu0 %v1043, 1
    %v1049 = vpop.permute.xlu0 %1048
    %1050 = vrot.lane.b32.xlu0 %v1044, 1
    %v1051 = vpop.permute.xlu0 %1050
    %1052 = vrot.lane.b32.xlu0 %v1045, 1
    %v1053 = vpop.permute.xlu0 %1052
    %v1054 = vsel %vm340, %v1047, %v1049
    %v1055 = vsel %vm340, %v1049, %v1051
    %v1056 = vsel %vm340, %v1051, %v1053
    %1057 = vrot.lane.b32.xlu0 %v1042, 17
    %v1058 = vpop.permute.xlu0 %1057
    %1059 = vrot.lane.b32.xlu0 %v1043, 17
    %v1060 = vpop.permute.xlu0 %1059
    %1061 = vrot.lane.b32.xlu0 %v1044, 17
    %v1062 = vpop.permute.xlu0 %1061
    %1063 = vrot.lane.b32.xlu0 %v1045, 17
    %v1064 = vpop.permute.xlu0 %1063
    %v1065 = vsel %vm699, %v1058, %v1060
    %v1066 = vsel %vm699, %v1060, %v1062
    %v1067 = vsel %vm699, %v1062, %v1064
    %v1070 = vunpack.c.l.b16 %v1028
    %v1071 = vunpack.c.l.b16 %v1029
    %v1072 = vpack.c.b16 %v1071, %v1070
    %1073 = vrot.lane.b32.xlu0 %v1042, 18
    %v1074 = vpop.permute.xlu0 %1073
    %1075 = vrot.lane.b32.xlu0 %v1043, 18
    %v1076 = vpop.permute.xlu0 %1075
    %1077 = vrot.lane.b32.xlu0 %v1072, 18
    %v1078 = vpop.permute.xlu0 %1077
    %vm1079 = vcmask 146432
    %v1080 = vsel %vm1079, %v1074, %v1076
    %v1081 = vsel %vm1079, %v1076, %v1078
    %v1083 = vunpack.c.l.b16 %v1023
    %v1084 = vunpack.c.h.b16 %v1023
    %v1085 = vpack.c.b16 %v1083, %v1083
    %v1086 = vpack.c.b16 %v1084, %v1084
    %1087 = vrot.lane.b32.xlu0 %v1085, 48
    %v1088 = vpop.permute.xlu0 %1087
    %1089 = vrot.lane.b32.xlu0 %v1086, 48
    %v1090 = vpop.permute.xlu0 %1089
    %vm1091 = vcmask 392192
    %v1092 = vsel %vm1091, %v1088, %v1090
    %1093 = vrot.lane.b32.xlu0 %v1042, 110
    %v1094 = vpop.permute.xlu0 %1093
    %1095 = vrot.lane.b32.xlu0 %v1043, 110
    %v1096 = vpop.permute.xlu0 %1095
    %1097 = vrot.lane.b32.xlu0 %v1044, 110
    %v1098 = vpop.permute.xlu0 %1097
    %1099 = vrot.lane.b32.xlu0 %v1045, 110
    %v1100 = vpop.permute.xlu0 %1099
    %1101 = vrot.lane.b32.xlu0 %v1047, 110
    %v1102 = vpop.permute.xlu0 %1101
    %1103 = vrot.lane.b32.xlu0 %v1054, 110
    %v1104 = vpop.permute.xlu0 %1103
    %1105 = vrot.lane.b32.xlu0 %v1055, 110
    %v1106 = vpop.permute.xlu0 %1105
    %1107 = vrot.lane.b32.xlu0 %v1056, 110
    %v1108 = vpop.permute.xlu0 %1107
    %1109 = vrot.lane.b32.xlu0 %v1058, 110
    %v1110 = vpop.permute.xlu0 %1109
    %1111 = vrot.lane.b32.xlu0 %v1065, 110
    %v1112 = vpop.permute.xlu0 %1111
    %1113 = vrot.lane.b32.xlu0 %v1066, 110
    %v1114 = vpop.permute.xlu0 %1113
    %1115 = vrot.lane.b32.xlu0 %v1067, 110
    %v1116 = vpop.permute.xlu0 %1115
    %1117 = vrot.lane.b32.xlu0 %v1074, 110
    %v1118 = vpop.permute.xlu0 %1117
    %1119 = vrot.lane.b32.xlu0 %v1080, 110
    %v1120 = vpop.permute.xlu0 %1119
    %1121 = vrot.lane.b32.xlu0 %v1081, 110
    %v1122 = vpop.permute.xlu0 %1121
    %1123 = vrot.lane.b32.xlu0 %v1078, 110
    %v1124 = vpop.permute.xlu0 %1123
    %vm1125 = vcmask 900096
    %v1126 = vsel %vm1125, %v1094, %v1096
    %v1127 = vsel %vm1125, %v1096, %v1098
    %v1128 = vsel %vm1125, %v1098, %v1100
    %v1129 = vsel %vm1125, %v1102, %v1104
    %v1130 = vsel %vm1125, %v1104, %v1106
    %v1131 = vsel %vm1125, %v1106, %v1108
    %v1132 = vsel %vm1125, %v1110, %v1112
    %v1133 = vsel %vm1125, %v1112, %v1114
    %v1134 = vsel %vm1125, %v1114, %v1116
    %v1135 = vsel %vm1125, %v1118, %v1120
    %v1136 = vsel %vm1125, %v1120, %v1122
    %v1137 = vsel %vm1125, %v1122, %v1124
    %vm1150 = vcmask 523264
    %v1152 = vsel %vm1150, %v1092, 0
    %1154 = vmatprep.subr.bf16.mxu0 0
    %1155 = vmatpush1.bf16.msra.mxu0 0
    %1156 = vmatprep.subr.bf16.mxu0 0
    %1157 = vmatpush1.bf16.msra.mxu0 0
    %1158 = vmatprep.subr.bf16.mxu0 0
    %1159 = vmatpush1.bf16.msra.mxu0 0
    %1160 = vmatprep.subr.bf16.mxu0 0
    %1161 = vmatpush1.bf16.msra.mxu0 0
    %1162 = vmatprep.subr.bf16.mxu0 %v1136
    %1163 = vmatpush1.bf16.msra.mxu0 %v1135
    %1164 = vmatprep.subr.bf16.mxu0 %v1133
    %1165 = vmatpush1.bf16.msra.mxu0 %v1132
    %1166 = vmatprep.subr.bf16.mxu0 %v1130
    %1167 = vmatpush1.bf16.msra.mxu0 %v1129
    %1168 = vmatprep.subr.bf16.mxu0 %v1127
    %1169 = vmatpush1.bf16.msra.mxu0 %v1126
    %1170 = vmatprep.subr.bf16.mxu0 0
    %1171 = vmatpush2.bf16.msra.mxu0 0
    %1172 = vmatprep.subr.bf16.mxu0 0
    %1173 = vmatpush2.bf16.msra.mxu0 0
    %1174 = vmatprep.subr.bf16.mxu0 0
    %1175 = vmatpush2.bf16.msra.mxu0 0
    %1176 = vmatprep.subr.bf16.mxu0 0
    %1177 = vmatpush2.bf16.msra.mxu0 0
    %1178 = vmatprep.subr.bf16.mxu0 0
    %1179 = vmatpush2.bf16.msra.mxu0 0
    %1180 = vmatprep.subr.bf16.mxu0 0
    %1181 = vmatpush2.bf16.msra.mxu0 0
    %1182 = vmatprep.subr.bf16.mxu0 0
    %1183 = vmatpush2.bf16.msra.mxu0 0
    %1184 = vmatprep.subr.bf16.mxu0 0
    %1185 = vmatpush2.bf16.msra.mxu0 0
    %1186 = vmatprep.mubr.bf16.mxu0 0
    %1187 = vmatmul.mubr.bf16.gmra.mxu0 %v1152
    %v1188 = vpop.f32.mrf.mxu0
    %v1189 = vadd.f32 %v48, %v1188
    %v1190 = vpop.f32.mrf.mxu0
    %v1191 = vadd.f32 %v48, %v1190
    %v1192 = vpop.f32.mrf.mxu0
    %v1193 = vpop.f32.mrf.mxu0
    %1194 = vdwg.mxu0
    %1195 = vmatprep.subr.bf16.mxu0 0
    %1196 = vmatpush1.bf16.msra.mxu0 0
    %1197 = vmatprep.subr.bf16.mxu0 0
    %1198 = vmatpush1.bf16.msra.mxu0 0
    %1199 = vmatprep.subr.bf16.mxu0 0
    %1200 = vmatpush1.bf16.msra.mxu0 0
    %1201 = vmatprep.subr.bf16.mxu0 0
    %1202 = vmatpush1.bf16.msra.mxu0 0
    %1203 = vmatprep.subr.bf16.mxu0 0
    %1204 = vmatpush1.bf16.msra.mxu0 %v1137
    %1205 = vmatprep.subr.bf16.mxu0 0
    %1206 = vmatpush1.bf16.msra.mxu0 %v1134
    %1207 = vmatprep.subr.bf16.mxu0 0
    %1208 = vmatpush1.bf16.msra.mxu0 %v1131
    %1209 = vmatprep.subr.bf16.mxu0 0
    %1210 = vmatpush1.bf16.msra.mxu0 %v1128
    %1211 = vmatprep.subr.bf16.mxu0 0
    %1212 = vmatpush2.bf16.msra.mxu0 0
    %1213 = vmatprep.subr.bf16.mxu0 0
    %1214 = vmatpush2.bf16.msra.mxu0 0
    %1215 = vmatprep.subr.bf16.mxu0 0
    %1216 = vmatpush2.bf16.msra.mxu0 0
    %1217 = vmatprep.subr.bf16.mxu0 0
    %1218 = vmatpush2.bf16.msra.mxu0 0
    %1219 = vmatprep.subr.bf16.mxu0 0
    %1220 = vmatpush2.bf16.msra.mxu0 0
    %1221 = vmatprep.subr.bf16.mxu0 0
    %1222 = vmatpush2.bf16.msra.mxu0 0
    %1223 = vmatprep.subr.bf16.mxu0 0
    %1224 = vmatpush2.bf16.msra.mxu0 0
    %1225 = vmatprep.subr.bf16.mxu0 0
    %1226 = vmatpush2.bf16.msra.mxu0 0
    %1227 = vmatprep.mubr.bf16.mxu0 0
    %1228 = vmatmul.mubr.bf16.gmra.mxu0 %v1152
    %v1229 = vpop.f32.mrf.mxu0
    %v1230 = vadd.f32 %v48, %v1229
    %v1231 = vpop.f32.mrf.mxu0
    %v1232 = vpop.f32.mrf.mxu0
    %v1233 = vpop.f32.mrf.mxu0
    %1234 = vdwg.mxu0
    %v1236 = vlaneseq
    %v1237 = vshrl.u32 %v1236, 7
    %v1238 = vsub.s32 0, %v1237
    %v1239 = vrot.slane %v1022, %v1238
    %v1240 = vlaneseq
    %v1241 = vshrl.u32 %v1240, 7
    %v1242 = vsub.s32 1, %v1241
    %v1243 = vrot.slane %v1022, %v1242
    %v1244 = vlaneseq
    %v1245 = vshrl.u32 %v1244, 7
    %v1246 = vsub.s32 2, %v1245
    %v1247 = vrot.slane %v1022, %v1246
    %v1251 = vmul.f32 %v1189, %v1239
    %v1252 = vmul.f32 %v1191, %v1243
    %v1253 = vmul.f32 %v1230, %v1247
    %v1254 = vadd.f32 %v1008, %v1251
    %v1255 = vadd.f32 %v1009, %v1252
    %v1256 = vadd.f32 %v1010, %v1253
    %v1257 = vmul.f32 %v1251, %v1251
    %v1258 = vmul.f32 %v1252, %v1252
    %v1259 = vmul.f32 %v1253, %v1253
    %v1260 = vadd.f32 %v1014, %v1257
    %v1261 = vadd.f32 %v1015, %v1258
    %v1262 = vadd.f32 %v1016, %v1259
    %s1263 = scalar_lea.vmem [#allocation2], 144
    %1264 = vst [vmem:[%s1263] sm:$0xff] %v1251
    %1265 = vst [vmem:[%s1263 + $0x8] sm:$0xff] %v1252
    %1266 = vst [vmem:[%s1263 + $0x10] sm:$0xff] %v1253
    %v1267 = vld [vmem:[%s1] sm:$0xff]
    %v1268 = vld [vmem:[%s183] sm:$0xff]
    %v1269 = vld [vmem:[%s183 + $0x8] sm:$0xff]
    %v1270 = vld [vmem:[%s183 + $0x10] sm:$0xff]
    %v1271 = vld [vmem:[%s183 + $0x18] sm:$0xff]
    %v1272 = vld [vmem:[%s183 + $0x8] sm:$0xf]
    %v1273 = vld [vmem:[%s183 + $0x18] sm:$0xf]
    %v1278 = vunpack.c.l.b16 %v1268
    %v1279 = vunpack.c.h.b16 %v1268
    %v1280 = vunpack.c.l.b16 %v1269
    %v1281 = vunpack.c.h.b16 %v1269
    %v1282 = vunpack.c.l.b16 %v1270
    %v1283 = vunpack.c.h.b16 %v1270
    %v1284 = vunpack.c.l.b16 %v1271
    %v1285 = vunpack.c.h.b16 %v1271
    %v1286 = vpack.c.b16 %v1282, %v1278
    %v1287 = vpack.c.b16 %v1283, %v1279
    %v1288 = vpack.c.b16 %v1284, %v1280
    %v1289 = vpack.c.b16 %v1285, %v1281
    %1290 = vrot.lane.b32.xlu0 %v1286, 1
    %v1291 = vpop.permute.xlu0 %1290
    %1292 = vrot.lane.b32.xlu0 %v1287, 1
    %v1293 = vpop.permute.xlu0 %1292
    %1294 = vrot.lane.b32.xlu0 %v1288, 1
    %v1295 = vpop.permute.xlu0 %1294
    %1296 = vrot.lane.b32.xlu0 %v1289, 1
    %v1297 = vpop.permute.xlu0 %1296
    %v1298 = vsel %vm340, %v1291, %v1293
    %v1299 = vsel %vm340, %v1293, %v1295
    %v1300 = vsel %vm340, %v1295, %v1297
    %1301 = vrot.lane.b32.xlu0 %v1286, 17
    %v1302 = vpop.permute.xlu0 %1301
    %1303 = vrot.lane.b32.xlu0 %v1287, 17
    %v1304 = vpop.permute.xlu0 %1303
    %1305 = vrot.lane.b32.xlu0 %v1288, 17
    %v1306 = vpop.permute.xlu0 %1305
    %1307 = vrot.lane.b32.xlu0 %v1289, 17
    %v1308 = vpop.permute.xlu0 %1307
    %v1309 = vsel %vm699, %v1302, %v1304
    %v1310 = vsel %vm699, %v1304, %v1306
    %v1311 = vsel %vm699, %v1306, %v1308
    %v1314 = vunpack.c.l.b16 %v1272
    %v1315 = vunpack.c.l.b16 %v1273
    %v1316 = vpack.c.b16 %v1315, %v1314
    %1317 = vrot.lane.b32.xlu0 %v1286, 18
    %v1318 = vpop.permute.xlu0 %1317
    %1319 = vrot.lane.b32.xlu0 %v1287, 18
    %v1320 = vpop.permute.xlu0 %1319
    %1321 = vrot.lane.b32.xlu0 %v1316, 18
    %v1322 = vpop.permute.xlu0 %1321
    %v1323 = vsel %vm1079, %v1318, %v1320
    %v1324 = vsel %vm1079, %v1320, %v1322
    %v1326 = vunpack.c.l.b16 %v1267
    %v1327 = vunpack.c.h.b16 %v1267
    %v1328 = vpack.c.b16 %v1326, %v1326
    %v1329 = vpack.c.b16 %v1327, %v1327
    %1330 = vrot.lane.b32.xlu0 %v1328, 48
    %v1331 = vpop.permute.xlu0 %1330
    %1332 = vrot.lane.b32.xlu0 %v1329, 48
    %v1333 = vpop.permute.xlu0 %1332
    %v1334 = vsel %vm1091, %v1331, %v1333
    %1335 = vrot.lane.b32.xlu0 %v1286, 110
    %v1336 = vpop.permute.xlu0 %1335
    %1337 = vrot.lane.b32.xlu0 %v1287, 110
    %v1338 = vpop.permute.xlu0 %1337
    %1339 = vrot.lane.b32.xlu0 %v1288, 110
    %v1340 = vpop.permute.xlu0 %1339
    %1341 = vrot.lane.b32.xlu0 %v1289, 110
    %v1342 = vpop.permute.xlu0 %1341
    %1343 = vrot.lane.b32.xlu0 %v1291, 110
    %v1344 = vpop.permute.xlu0 %1343
    %1345 = vrot.lane.b32.xlu0 %v1298, 110
    %v1346 = vpop.permute.xlu0 %1345
    %1347 = vrot.lane.b32.xlu0 %v1299, 110
    %v1348 = vpop.permute.xlu0 %1347
    %1349 = vrot.lane.b32.xlu0 %v1300, 110
    %v1350 = vpop.permute.xlu0 %1349
    %1351 = vrot.lane.b32.xlu0 %v1302, 110
    %v1352 = vpop.permute.xlu0 %1351
    %1353 = vrot.lane.b32.xlu0 %v1309, 110
    %v1354 = vpop.permute.xlu0 %1353
    %1355 = vrot.lane.b32.xlu0 %v1310, 110
    %v1356 = vpop.permute.xlu0 %1355
    %1357 = vrot.lane.b32.xlu0 %v1311, 110
    %v1358 = vpop.permute.xlu0 %1357
    %1359 = vrot.lane.b32.xlu0 %v1318, 110
    %v1360 = vpop.permute.xlu0 %1359
    %1361 = vrot.lane.b32.xlu0 %v1323, 110
    %v1362 = vpop.permute.xlu0 %1361
    %1363 = vrot.lane.b32.xlu0 %v1324, 110
    %v1364 = vpop.permute.xlu0 %1363
    %1365 = vrot.lane.b32.xlu0 %v1322, 110
    %v1366 = vpop.permute.xlu0 %1365
    %v1367 = vsel %vm1125, %v1336, %v1338
    %v1368 = vsel %vm1125, %v1338, %v1340
    %v1369 = vsel %vm1125, %v1340, %v1342
    %v1370 = vsel %vm1125, %v1344, %v1346
    %v1371 = vsel %vm1125, %v1346, %v1348
    %v1372 = vsel %vm1125, %v1348, %v1350
    %v1373 = vsel %vm1125, %v1352, %v1354
    %v1374 = vsel %vm1125, %v1354, %v1356
    %v1375 = vsel %vm1125, %v1356, %v1358
    %v1376 = vsel %vm1125, %v1360, %v1362
    %v1377 = vsel %vm1125, %v1362, %v1364
    %v1378 = vsel %vm1125, %v1364, %v1366
    %v1392 = vsel %vm1150, %v1334, 0
    %1394 = vmatprep.subr.bf16.mxu0 0
    %1395 = vmatpush1.bf16.msra.mxu0 0
    %1396 = vmatprep.subr.bf16.mxu0 0
    %1397 = vmatpush1.bf16.msra.mxu0 0
    %1398 = vmatprep.subr.bf16.mxu0 0
    %1399 = vmatpush1.bf16.msra.mxu0 0
    %1400 = vmatprep.subr.bf16.mxu0 0
    %1401 = vmatpush1.bf16.msra.mxu0 0
    %1402 = vmatprep.subr.bf16.mxu0 %v1377
    %1403 = vmatpush1.bf16.msra.mxu0 %v1376
    %1404 = vmatprep.subr.bf16.mxu0 %v1374
    %1405 = vmatpush1.bf16.msra.mxu0 %v1373
    %1406 = vmatprep.subr.bf16.mxu0 %v1371
    %1407 = vmatpush1.bf16.msra.mxu0 %v1370
    %1408 = vmatprep.subr.bf16.mxu0 %v1368
    %1409 = vmatpush1.bf16.msra.mxu0 %v1367
    %1410 = vmatprep.subr.bf16.mxu0 0
    %1411 = vmatpush2.bf16.msra.mxu0 0
    %1412 = vmatprep.subr.bf16.mxu0 0
    %1413 = vmatpush2.bf16.msra.mxu0 0
    %1414 = vmatprep.subr.bf16.mxu0 0
    %1415 = vmatpush2.bf16.msra.mxu0 0
    %1416 = vmatprep.subr.bf16.mxu0 0
    %1417 = vmatpush2.bf16.msra.mxu0 0
    %1418 = vmatprep.subr.bf16.mxu0 0
    %1419 = vmatpush2.bf16.msra.mxu0 0
    %1420 = vmatprep.subr.bf16.mxu0 0
    %1421 = vmatpush2.bf16.msra.mxu0 0
    %1422 = vmatprep.subr.bf16.mxu0 0
    %1423 = vmatpush2.bf16.msra.mxu0 0
    %1424 = vmatprep.subr.bf16.mxu0 0
    %1425 = vmatpush2.bf16.msra.mxu0 0
    %1426 = vmatprep.mubr.bf16.mxu0 0
    %1427 = vmatmul.mubr.bf16.gmra.mxu0 %v1392
    %v1428 = vpop.f32.mrf.mxu0
    %v1429 = vadd.f32 %v48, %v1428
    %v1430 = vpop.f32.mrf.mxu0
    %v1431 = vadd.f32 %v48, %v1430
    %v1432 = vpop.f32.mrf.mxu0
    %v1433 = vpop.f32.mrf.mxu0
    %1434 = vdwg.mxu0
    %1435 = vmatprep.subr.bf16.mxu0 0
    %1436 = vmatpush1.bf16.msra.mxu0 0
    %1437 = vmatprep.subr.bf16.mxu0 0
    %1438 = vmatpush1.bf16.msra.mxu0 0
    %1439 = vmatprep.subr.bf16.mxu0 0
    %1440 = vmatpush1.bf16.msra.mxu0 0
    %1441 = vmatprep.subr.bf16.mxu0 0
    %1442 = vmatpush1.bf16.msra.mxu0 0
    %1443 = vmatprep.subr.bf16.mxu0 0
    %1444 = vmatpush1.bf16.msra.mxu0 %v1378
    %1445 = vmatprep.subr.bf16.mxu0 0
    %1446 = vmatpush1.bf16.msra.mxu0 %v1375
    %1447 = vmatprep.subr.bf16.mxu0 0
    %1448 = vmatpush1.bf16.msra.mxu0 %v1372
    %1449 = vmatprep.subr.bf16.mxu0 0
    %1450 = vmatpush1.bf16.msra.mxu0 %v1369
    %1451 = vmatprep.subr.bf16.mxu0 0
    %1452 = vmatpush2.bf16.msra.mxu0 0
    %1453 = vmatprep.subr.bf16.mxu0 0
    %1454 = vmatpush2.bf16.msra.mxu0 0
    %1455 = vmatprep.subr.bf16.mxu0 0
    %1456 = vmatpush2.bf16.msra.mxu0 0
    %1457 = vmatprep.subr.bf16.mxu0 0
    %1458 = vmatpush2.bf16.msra.mxu0 0
    %1459 = vmatprep.subr.bf16.mxu0 0
    %1460 = vmatpush2.bf16.msra.mxu0 0
    %1461 = vmatprep.subr.bf16.mxu0 0
    %1462 = vmatpush2.bf16.msra.mxu0 0
    %1463 = vmatprep.subr.bf16.mxu0 0
    %1464 = vmatpush2.bf16.msra.mxu0 0
    %1465 = vmatprep.subr.bf16.mxu0 0
    %1466 = vmatpush2.bf16.msra.mxu0 0
    %1467 = vmatprep.mubr.bf16.mxu0 0
    %1468 = vmatmul.mubr.bf16.gmra.mxu0 %v1392
    %v1469 = vpop.f32.mrf.mxu0
    %v1470 = vadd.f32 %v48, %v1469
    %v1471 = vpop.f32.mrf.mxu0
    %v1472 = vpop.f32.mrf.mxu0
    %v1473 = vpop.f32.mrf.mxu0
    %1474 = vdwg.mxu0
    %v1475 = vmul.f32 %v1429, %v1239
    %v1476 = vmul.f32 %v1431, %v1243
    %v1477 = vmul.f32 %v1470, %v1247
    %v1478 = vadd.f32 %v1254, %v1475
    %v1479 = vadd.f32 %v1255, %v1476
    %v1480 = vadd.f32 %v1256, %v1477
    %v1481 = vmul.f32 %v1475, %v1475
    %v1482 = vmul.f32 %v1476, %v1476
    %v1483 = vmul.f32 %v1477, %v1477
    %v1484 = vadd.f32 %v1260, %v1481
    %v1485 = vadd.f32 %v1261, %v1482
    %v1486 = vadd.f32 %v1262, %v1483
    %s1487 = scalar_lea.vmem [#allocation2], 168
    %1488 = vst [vmem:[%s1487] sm:$0xff] %v1475
    %1489 = vst [vmem:[%s1487 + $0x8] sm:$0xff] %v1476
    %1490 = vst [vmem:[%s1487 + $0x10] sm:$0xff] %v1477
    %v1491 = vadd.f32 %v1478, %v1479
    %v1492 = vadd.f32 %v1491, %v1480
    %1493 = vadd.xlane.f32.xlu0 %v1492
    %v1494 = vpop.xlane.xlu0 %1493
    %v1495 = vmul.f32 %v1494, 0.0005202914
    %v1496 = vadd.f32 %v1484, %v1485
    %v1497 = vadd.f32 %v1496, %v1486
    %1498 = vadd.xlane.f32.xlu0 %v1497
    %v1499 = vpop.xlane.xlu0 %1498
    %v1500 = vmul.f32 %v1499, 0.0005202914
    %v1501 = vmul.f32 %v1495, %v1495
    %v1502 = vsub.f32 %v1500, %v1501
    %v1503 = vld [vmem:[%s3] sm:$0xff]
    %v1504 = vadd.f32 %v1502, 1e-05
    %v1505 = vrsqrt.pop %v1504
    %v1506 = vmul.f32 %v1503, %v1505
    %v1507 = vld [vmem:[%s4] sm:$0xff]
    %v1508 = vmul.f32 %v1495, %v1506
    %v1509 = vsub.f32 %v1507, %v1508
    %v1510 = vld [vmem:[#allocation2] sm:$0xff]
    %v1511 = vld [vmem:[#allocation2 + $0x8] sm:$0xff]
    %v1512 = vld [vmem:[#allocation2 + $0x10] sm:$0xff]
    %1514 = vset.pattern.permute.xlu0 0
    %1515 = vperm.xlu0 %1514, %v1506
    %v1516 = vpop.permute.xlu0 %1515
    %v1518 = vmul.f32 %v1510, %v1516
    %v1519 = vmul.f32 %v1511, %v1516
    %v1520 = vmul.f32 %v1512, %v1516
    %1522 = vset.pattern.permute.xlu0 0
    %1523 = vperm.xlu0 %1522, %v1509
    %v1524 = vpop.permute.xlu0 %1523
    %v1526 = vadd.f32 %v1518, %v1524
    %v1527 = vadd.f32 %v1519, %v1524
    %v1528 = vadd.f32 %v1520, %v1524
    %v1529 = vmax.f32 %v1526, 0.0
    %v1530 = vmax.f32 %v1527, 0.0
    %v1531 = vmax.f32 %v1528, 0.0
    %1532 = vst [vmem:[%s6] sm:$0xff] %v1529
    %1533 = vst [vmem:[%s6 + $0x8] sm:$0xff] %v1530
    %1534 = vst [vmem:[%s6 + $0x10] sm:$0xff] %v1531
    %v1535 = vld [vmem:[%s300] sm:$0xff]
    %v1536 = vld [vmem:[%s300 + $0x8] sm:$0xff]
    %v1537 = vld [vmem:[%s300 + $0x10] sm:$0xff]
    %v1538 = vmul.f32 %v1535, %v1516
    %v1539 = vmul.f32 %v1536, %v1516
    %v1540 = vmul.f32 %v1537, %v1516
    %v1541 = vadd.f32 %v1538, %v1524
    %v1542 = vadd.f32 %v1539, %v1524
    %v1543 = vadd.f32 %v1540, %v1524
    %v1544 = vmax.f32 %v1541, 0.0
    %v1545 = vmax.f32 %v1542, 0.0
    %v1546 = vmax.f32 %v1543, 0.0
    %s1547 = scalar_lea.vmem %s6, 24
    %1548 = vst [vmem:[%s1547] sm:$0xff] %v1544
    %1549 = vst [vmem:[%s1547 + $0x8] sm:$0xff] %v1545
    %1550 = vst [vmem:[%s1547 + $0x10] sm:$0xff] %v1546
    %v1551 = vld [vmem:[%s490] sm:$0xff]
    %v1552 = vld [vmem:[%s490 + $0x8] sm:$0xff]
    %v1553 = vld [vmem:[%s490 + $0x10] sm:$0xff]
    %v1554 = vmul.f32 %v1551, %v1516
    %v1555 = vmul.f32 %v1552, %v1516
    %v1556 = vmul.f32 %v1553, %v1516
    %v1557 = vadd.f32 %v1554, %v1524
    %v1558 = vadd.f32 %v1555, %v1524
    %v1559 = vadd.f32 %v1556, %v1524
    %v1560 = vmax.f32 %v1557, 0.0
    %v1561 = vmax.f32 %v1558, 0.0
    %v1562 = vmax.f32 %v1559, 0.0
    %s1563 = scalar_lea.vmem %s6, 48
    %1564 = vst [vmem:[%s1563] sm:$0xff] %v1560
    %1565 = vst [vmem:[%s1563 + $0x8] sm:$0xff] %v1561
    %1566 = vst [vmem:[%s1563 + $0x10] sm:$0xff] %v1562
    %v1567 = vld [vmem:[%s659] sm:$0xff]
    %v1568 = vld [vmem:[%s659 + $0x8] sm:$0xff]
    %v1569 = vld [vmem:[%s659 + $0x10] sm:$0xff]
    %v1570 = vmul.f32 %v1567, %v1516
    %v1571 = vmul.f32 %v1568, %v1516
    %v1572 = vmul.f32 %v1569, %v1516
    %v1573 = vadd.f32 %v1570, %v1524
    %v1574 = vadd.f32 %v1571, %v1524
    %v1575 = vadd.f32 %v1572, %v1524
    %v1576 = vmax.f32 %v1573, 0.0
    %v1577 = vmax.f32 %v1574, 0.0
    %v1578 = vmax.f32 %v1575, 0.0
    %s1579 = scalar_lea.vmem %s6, 72
    %1580 = vst [vmem:[%s1579] sm:$0xff] %v1576
    %1581 = vst [vmem:[%s1579 + $0x8] sm:$0xff] %v1577
    %1582 = vst [vmem:[%s1579 + $0x10] sm:$0xff] %v1578
    %v1583 = vld [vmem:[%s848] sm:$0xff]
    %v1584 = vld [vmem:[%s848 + $0x8] sm:$0xff]
    %v1585 = vld [vmem:[%s848 + $0x10] sm:$0xff]
    %v1586 = vmul.f32 %v1583, %v1516
    %v1587 = vmul.f32 %v1584, %v1516
    %v1588 = vmul.f32 %v1585, %v1516
    %v1589 = vadd.f32 %v1586, %v1524
    %v1590 = vadd.f32 %v1587, %v1524
    %v1591 = vadd.f32 %v1588, %v1524
    %v1592 = vmax.f32 %v1589, 0.0
    %v1593 = vmax.f32 %v1590, 0.0
    %v1594 = vmax.f32 %v1591, 0.0
    %s1595 = scalar_lea.vmem %s6, 96
    %1596 = vst [vmem:[%s1595] sm:$0xff] %v1592
    %1597 = vst [vmem:[%s1595 + $0x8] sm:$0xff] %v1593
    %1598 = vst [vmem:[%s1595 + $0x10] sm:$0xff] %v1594
    %v1599 = vld [vmem:[%s1017] sm:$0xff]
    %v1600 = vld [vmem:[%s1017 + $0x8] sm:$0xff]
    %v1601 = vld [vmem:[%s1017 + $0x10] sm:$0xff]
    %v1602 = vmul.f32 %v1599, %v1516
    %v1603 = vmul.f32 %v1600, %v1516
    %v1604 = vmul.f32 %v1601, %v1516
    %v1605 = vadd.f32 %v1602, %v1524
    %v1606 = vadd.f32 %v1603, %v1524
    %v1607 = vadd.f32 %v1604, %v1524
    %v1608 = vmax.f32 %v1605, 0.0
    %v1609 = vmax.f32 %v1606, 0.0
    %v1610 = vmax.f32 %v1607, 0.0
    %s1611 = scalar_lea.vmem %s6, 120
    %1612 = vst [vmem:[%s1611] sm:$0xff] %v1608
    %1613 = vst [vmem:[%s1611 + $0x8] sm:$0xff] %v1609
    %1614 = vst [vmem:[%s1611 + $0x10] sm:$0xff] %v1610
    %v1615 = vld [vmem:[%s1263] sm:$0xff]
    %v1616 = vld [vmem:[%s1263 + $0x8] sm:$0xff]
    %v1617 = vld [vmem:[%s1263 + $0x10] sm:$0xff]
    %v1618 = vmul.f32 %v1615, %v1516
    %v1619 = vmul.f32 %v1616, %v1516
    %v1620 = vmul.f32 %v1617, %v1516
    %v1621 = vadd.f32 %v1618, %v1524
    %v1622 = vadd.f32 %v1619, %v1524
    %v1623 = vadd.f32 %v1620, %v1524
    %v1624 = vmax.f32 %v1621, 0.0
    %v1625 = vmax.f32 %v1622, 0.0
    %v1626 = vmax.f32 %v1623, 0.0
    %s1627 = scalar_lea.vmem %s6, 144
    %1628 = vst [vmem:[%s1627] sm:$0xff] %v1624
    %1629 = vst [vmem:[%s1627 + $0x8] sm:$0xff] %v1625
    %1630 = vst [vmem:[%s1627 + $0x10] sm:$0xff] %v1626
    %v1631 = vld [vmem:[%s1487] sm:$0xff]
    %v1632 = vld [vmem:[%s1487 + $0x8] sm:$0xff]
    %v1633 = vld [vmem:[%s1487 + $0x10] sm:$0xff]
    %v1634 = vmul.f32 %v1631, %v1516
    %v1635 = vmul.f32 %v1632, %v1516
    %v1636 = vmul.f32 %v1633, %v1516
    %v1637 = vadd.f32 %v1634, %v1524
    %v1638 = vadd.f32 %v1635, %v1524
    %v1639 = vadd.f32 %v1636, %v1524
    %v1640 = vmax.f32 %v1637, 0.0
    %v1641 = vmax.f32 %v1638, 0.0
    %v1642 = vmax.f32 %v1639, 0.0
    %s1643 = scalar_lea.vmem %s6, 168
    %1644 = vst [vmem:[%s1643] sm:$0xff] %v1640
    %1645 = vst [vmem:[%s1643 + $0x8] sm:$0xff] %v1641
    %1646 = vst [vmem:[%s1643 + $0x10] sm:$0xff] %v1642
    // Predicated region
    $region30: #{deconv_block_forward.1} parent=1 // pred_check
      _
    $region31: #{deconv_block_forward.1} parent=1 // pred_check_branch
      %1648 = sbr.rel (0) target = $region33
    $region32: #{deconv_block_forward.1} parent=1 // pred_region
      _
    $region33: #{deconv_block_forward.1} parent=1 // pred_fallthru
      _
    // Predicated region
    $region34: #{deconv_block_forward.1} parent=1 // pred_check
      _
    $region35: #{deconv_block_forward.1} parent=1 // pred_check_branch
      %1650 = sbr.rel (0) target = $region37
    $region36: #{deconv_block_forward.1} parent=1 // pred_region
      _
    $region37: #{deconv_block_forward.1} parent=1 // pred_fallthru
      _
    %1651 = vsyncpa [#allocation4], 1

</llo_original>
